<compile_context>
chip_gen: v7x
topology: tpu7x:2x2x1
jax: 0.10.0
libtpu: 0.0.40
codegen_flags: <defaults>
</compile_context>

<pallas_src>
import functools

import jax
import jax.numpy as jnp
from jax.experimental import pallas as pl
from jax.experimental.pallas import tpu as pltpu


# ----------------------------------------------------------------------------- helpers

def _bilinear_matrix(in_size: int, out_size: int) -> jnp.ndarray:
    """Dense (out_size, in_size) 1-D interpolation matrix reproducing
    F.interpolate(mode='bilinear', align_corners=False) along one axis."""
    i = jnp.arange(out_size, dtype=jnp.float32)
    src = (i + 0.5) * (in_size / out_size) - 0.5
    src = jnp.maximum(src, 0.0)                    # PyTorch clamps negative source idx to 0
    i0 = jnp.minimum(jnp.floor(src).astype(jnp.int32), in_size - 1)
    i1 = jnp.minimum(i0 + 1, in_size - 1)
    w1 = src - i0.astype(jnp.float32)
    w0 = 1.0 - w1
    return (w0[:, None] * jax.nn.one_hot(i0, in_size, dtype=jnp.float32)
            + w1[:, None] * jax.nn.one_hot(i1, in_size, dtype=jnp.float32))


# ----------------------------------------------------------------------------- fused kernel

def _lraspp_kernel(embT_ref, qT_ref, wcbrT_ref, bns_ref, bnb_ref, wscT_ref,
                   weclsT_ref, wqclsT_ref, bias_ref, m1T_ref, m2T_ref, o_ref):
    embT = embT_ref[0]            # (Ce, He*We)  channels on sublanes, pixels on lanes
    qT = qT_ref[0]                # (Cq, Hq*Wq)

    # cbr branch: 1x1 conv (no bias) -> inference BatchNorm folded to per-channel affine -> ReLU
    xT = jnp.dot(wcbrT_ref[...], embT, preferred_element_type=jnp.float32)     # (Ci, He*We)
    xT = jnp.maximum(xT * bns_ref[...] + bnb_ref[...], 0.0)

    # scale branch: AdaptiveAvgPool2d(1) -> 1x1 conv (bias=False) -> sigmoid
    # (mean over pixels commutes with the 1x1 conv, so pool after the matmul: avoids an N=1 dot)
    s = jax.nn.sigmoid(jnp.mean(
        jnp.dot(wscT_ref[...], embT, preferred_element_type=jnp.float32),
        axis=1, keepdims=True))                                                # (Ci, 1)
    xT = xT * s                                                                # broadcast over pixels

    # classifiers (1x1 convs), channel-major so nc rides the sublane axis.
    # The embedding classifier is applied *before* the bilinear resize (linear ops commute
    # exactly), so the resizes only move nc channels instead of Ci.
    e_lowT = jnp.dot(weclsT_ref[...], xT, preferred_element_type=jnp.float32)  # (nc, He*We)
    q_logT = jnp.dot(wqclsT_ref[...], qT, preferred_element_type=jnp.float32)  # (nc, Hq*Wq)

    # bilinear resize He*We -> Hq*Wq (separable-kron matrix on the right, bf16, f32 accumulate)
    e_upT = jnp.dot(e_lowT.astype(m1T_ref.dtype), m1T_ref[...],
                    preferred_element_type=jnp.float32)                        # (nc, Hq*Wq)

    logitsT = q_logT + e_upT + bias_ref[...]                                   # (nc, Hq*Wq)

    # bilinear resize Hq*Wq -> Ho*Wo: (M=nc, K=Hq*Wq, N=Ho*Wo) lane-dense matmul and a
    # lane-dense (nc, Ho*Wo) store.
    o_ref[0] = jnp.dot(logitsT.astype(m2T_ref.dtype), m2T_ref[...],
                       preferred_element_type=jnp.float32)


# ----------------------------------------------------------------------------- wrapper

@functools.partial(jax.jit, static_argnames="output_image_size")
def lraspp_forward(quarter_nchw, embedding_nchw, params, *, output_image_size):
    B, Cq, Hq, Wq = quarter_nchw.shape
    _, Ce, He, We = embedding_nchw.shape
    Ci = params["w_cbr"].shape[1]
    nc = params["w_qcls"].shape[1]
    Ho, Wo = output_image_size
    HeWe, HqWq, HoWo = He * We, Hq * Wq, Ho * Wo

    # NCHW-flattened views (B, C, H*W) -- no transposes anywhere in the wrapper.
    embT = embedding_nchw.reshape(B, Ce, HeWe)
    qT = quarter_nchw.reshape(B, Cq, HqWq)

    # Fold inference-mode BatchNorm (running stats) into a per-channel affine (column vectors).
    # TODO(synk): a PyTorch module in train() mode would use batch statistics instead.
    bn_scale = (params["bn_gamma"] / jnp.sqrt(params["bn_var"] + 1e-5)).reshape(Ci, 1)
    bn_shift = params["bn_beta"].reshape(Ci, 1) - params["bn_mean"].reshape(Ci, 1) * bn_scale

    # Channel-major (transposed) weights; 1x1 convs become left matmuls.
    w_cbrT = params["w_cbr"].T            # (Ci, Ce)
    w_scaleT = params["w_scale"].T        # (Ci, Ce)   -- scale conv has bias=False per the module
    w_eclsT = params["w_ecls"].T          # (nc, Ci)
    w_qclsT = params["w_qcls"].T          # (nc, Cq)
    bias = (params["b_qcls"] + params["b_ecls"]).reshape(nc, 1)

    # Dense separable-bilinear resize matrices (kron of 1-D matrices), transposed so the resize is
    # a right matmul with pixels on the lane axis.  bf16 halves the DMA payload; MXU accumulates
    # in f32.  Shape-only computation -> constant-folded under jit.
    # TODO(synk): at production spatial sizes replace these quadratic-in-pixel-count kron matrices
    # with two separable 1-D resize matmuls to keep VMEM/DMA bounded (v7x has only 64 MiB VMEM).
    m1T = jnp.kron(_bilinear_matrix(He, Hq).T,
                   _bilinear_matrix(We, Wq).T).astype(jnp.bfloat16)   # (He*We, Hq*Wq)
    m2T = jnp.kron(_bilinear_matrix(Hq, Ho).T,
                   _bilinear_matrix(Wq, Wo).T).astype(jnp.bfloat16)   # (Hq*Wq, Ho*Wo)

    flops = 2 * B * (2 * Ci * Ce * HeWe + nc * Ci * HeWe + nc * Cq * HqWq
                     + nc * HeWe * HqWq + nc * HqWq * HoWo)
    bytes_accessed = (4 * (B * Ce * HeWe + B * Cq * HqWq + 2 * Ci * Ce + 2 * Ci
                           + nc * Ci + nc * Cq + nc + B * nc * HoWo)
                      + 2 * (HeWe * HqWq + HqWq * HoWo))

    def bcast(shape):
        return pl.BlockSpec(shape, lambda b: (0,) * len(shape))

    outT = pl.pallas_call(
        _lraspp_kernel,
        out_shape=jax.ShapeDtypeStruct((B, nc, HoWo), jnp.float32),
        grid=(B,),
        in_specs=[
            pl.BlockSpec((1, Ce, HeWe), lambda b: (b, 0, 0)),   # embedding (per batch)
            pl.BlockSpec((1, Cq, HqWq), lambda b: (b, 0, 0)),   # quarter   (per batch)
            bcast((Ci, Ce)), bcast((Ci, 1)), bcast((Ci, 1)),    # w_cbrT, bn_scale, bn_shift
            bcast((Ci, Ce)),                                    # w_scaleT
            bcast((nc, Ci)), bcast((nc, Cq)), bcast((nc, 1)),   # w_eclsT, w_qclsT, bias
            bcast((HeWe, HqWq)), bcast((HqWq, HoWo)),           # m1T, m2T (fetched once)
        ],
        out_specs=pl.BlockSpec((1, nc, HoWo), lambda b: (b, 0, 0)),
        # "parallel" lets v7x shard the batch across its two TensorCores; measured neutral on
        # single-TC v5e/v6e.
        compiler_params=pltpu.CompilerParams(dimension_semantics=("parallel",)),
        cost_estimate=pl.CostEstimate(flops=flops, transcendentals=B * Ci,
                                      bytes_accessed=bytes_accessed),
    )(embT, qT, w_cbrT, bn_scale, bn_shift, w_scaleT, w_eclsT, w_qclsT, bias, m1T, m2T)

    # (B, nc, Ho*Wo) is already NCHW-flattened: a pure reshape, no transpose.
    return outT.reshape(B, nc, Ho, Wo)


# ----------------------------------------------------------------------------- reference

def _resize_nchw(x, Ho, Wo):
    _, _, H, W = x.shape
    mh = _bilinear_matrix(H, Ho)
    mw = _bilinear_matrix(W, Wo)
    return jnp.einsum("oh,bchw,pw->bcop", mh, x, mw)


def lraspp_reference(quarter, embedding, params, output_image_size):
    """Pure-JAX NCHW reference mirroring the PyTorch forward order (inference-mode BN)."""
    eps = 1e-5
    x = jnp.einsum("bchw,cd->bdhw", embedding, params["w_cbr"])
    scale = params["bn_gamma"] / jnp.sqrt(params["bn_var"] + eps)
    shift = params["bn_beta"] - params["bn_mean"] * scale
    x = jnp.maximum(x * scale[None, :, None, None] + shift[None, :, None, None], 0.0)
    pooled = jnp.mean(embedding, axis=(2, 3))                              # (B, Ce)
    s = jax.nn.sigmoid(pooled @ params["w_scale"])                         # scale conv: bias=False
    x = x * s[:, :, None, None]
    Hq, Wq = quarter.shape[2], quarter.shape[3]
    x = _resize_nchw(x, Hq, Wq)
    logits = (jnp.einsum("bchw,cn->bnhw", quarter, params["w_qcls"])
              + params["b_qcls"][None, :, None, None]
              + jnp.einsum("bchw,cn->bnhw", x, params["w_ecls"])
              + params["b_ecls"][None, :, None, None])
    return _resize_nchw(logits, *output_image_size)


# ----------------------------------------------------------------------------- main

if __name__ == "__main__":
    # small shapes consistent with the module:
    #   quarter features  : (B=2, Cq=8,  Hq=16, Wq=16)
    #   embedding features: (B=2, Ce=32, He=8,  We=8)
    #   internal_channels = 128, num_classes = 3, output_image_size = (32, 32)
    B, Cq, Hq, Wq = 2, 8, 16, 16
    Ce, He, We = 32, 8, 8
    Ci, nc = 128, 3
    output_image_size = (32, 32)

    key = jax.random.PRNGKey(0)
    ks = jax.random.split(key, 12)

    params = dict(
        w_cbr=jax.random.normal(ks[0], (Ce, Ci), jnp.float32) * 0.1,
        bn_gamma=1.0 + 0.1 * jax.random.normal(ks[1], (Ci,), jnp.float32),
        bn_beta=0.1 * jax.random.normal(ks[2], (Ci,), jnp.float32),
        bn_mean=0.1 * jax.random.normal(ks[3], (Ci,), jnp.float32),
        bn_var=jax.random.uniform(ks[4], (Ci,), jnp.float32, minval=0.5, maxval=1.5),
        w_scale=jax.random.normal(ks[5], (Ce, Ci), jnp.float32) * 0.1,  # scale conv, bias=False
        w_qcls=jax.random.normal(ks[6], (Cq, nc), jnp.float32) * 0.1,
        b_qcls=0.1 * jax.random.normal(ks[7], (nc,), jnp.float32),
        w_ecls=jax.random.normal(ks[8], (Ci, nc), jnp.float32) * 0.1,
        b_ecls=0.1 * jax.random.normal(ks[9], (nc,), jnp.float32),
    )

    quarter = jax.random.normal(ks[10], (B, Cq, Hq, Wq), jnp.float32)
    embedding = jax.random.normal(ks[11], (B, Ce, He, We), jnp.float32)

    out = lraspp_forward(quarter, embedding, params, output_image_size=output_image_size)
    jax.block_until_ready(out)

    ref = lraspp_reference(quarter, embedding, params, output_image_size)
    assert out.shape == (B, nc, *output_image_size), out.shape
    # Tolerance is looser than pure-f32 because the resize matrices (the dominant DMA payload)
    # are held in bf16 and the classifier is algebraically commuted with the first resize;
    # observed error is ~1e-3, bound is well under 5e-2.
    max_err = float(jnp.max(jnp.abs(out - ref)))
    assert jnp.allclose(out, ref, atol=5e-2, rtol=5e-2), max_err

    print("KERNEL_OK")
</pallas_src>

<mosaic_0001>
module attributes {stable_mosaic.version = 11 : i64} {
  func.func @_lraspp_kernel(%arg0: i32, %arg1: memref<1x32x64xf32, #tpu.memory_space<vmem>>, %arg2: memref<1x8x256xf32, #tpu.memory_space<vmem>>, %arg3: memref<128x32xf32, #tpu.memory_space<vmem>>, %arg4: memref<128x1xf32, #tpu.memory_space<vmem>>, %arg5: memref<128x1xf32, #tpu.memory_space<vmem>>, %arg6: memref<128x32xf32, #tpu.memory_space<vmem>>, %arg7: memref<3x128xf32, #tpu.memory_space<vmem>>, %arg8: memref<3x8xf32, #tpu.memory_space<vmem>>, %arg9: memref<3x1xf32, #tpu.memory_space<vmem>>, %arg10: memref<64x256xbf16, #tpu.memory_space<vmem>>, %arg11: memref<256x1024xbf16, #tpu.memory_space<vmem>>, %arg12: memref<1x3x1024xf32, #tpu.memory_space<vmem>>) attributes {dimension_semantics = [#tpu.dimension_semantics<parallel>], iteration_bounds = array<i64: 2>, scalar_prefetch = 0 : i64, scratch_operands = 0 : i64, tpu.core_type = #tpu.core_type<tc>, window_params = [{transform_indices = @transform_0, window_bounds = array<i64: 1, 32, 64>}, {transform_indices = @transform_1, window_bounds = array<i64: 1, 8, 256>}, {pipeline_mode = #tpu.pipeline_mode<synchronous>, transform_indices = @transform_2, window_bounds = array<i64: 128, 32>}, {pipeline_mode = #tpu.pipeline_mode<synchronous>, transform_indices = @transform_3, window_bounds = array<i64: 128, 1>}, {pipeline_mode = #tpu.pipeline_mode<synchronous>, transform_indices = @transform_4, window_bounds = array<i64: 128, 1>}, {pipeline_mode = #tpu.pipeline_mode<synchronous>, transform_indices = @transform_5, window_bounds = array<i64: 128, 32>}, {pipeline_mode = #tpu.pipeline_mode<synchronous>, transform_indices = @transform_6, window_bounds = array<i64: 3, 128>}, {pipeline_mode = #tpu.pipeline_mode<synchronous>, transform_indices = @transform_7, window_bounds = array<i64: 3, 8>}, {pipeline_mode = #tpu.pipeline_mode<synchronous>, transform_indices = @transform_8, window_bounds = array<i64: 3, 1>}, {pipeline_mode = #tpu.pipeline_mode<synchronous>, transform_indices = @transform_9, window_bounds = array<i64: 64, 256>}, {pipeline_mode = #tpu.pipeline_mode<synchronous>, transform_indices = @transform_10, window_bounds = array<i64: 256, 1024>}, {transform_indices = @transform_11, window_bounds = array<i64: 1, 3, 1024>}]} {
    %c0 = arith.constant 0 : index
    %c0_0 = arith.constant 0 : index
    %c0_1 = arith.constant 0 : index
    %0 = vector.load %arg1[%c0, %c0_0, %c0_1] : memref<1x32x64xf32, #tpu.memory_space<vmem>>, vector<1x32x64xf32>
    %1 = vector.shape_cast %0 : vector<1x32x64xf32> to vector<32x64xf32>
    %c0_2 = arith.constant 0 : index
    %c0_3 = arith.constant 0 : index
    %c0_4 = arith.constant 0 : index
    %2 = vector.load %arg2[%c0_2, %c0_3, %c0_4] : memref<1x8x256xf32, #tpu.memory_space<vmem>>, vector<1x8x256xf32>
    %3 = vector.shape_cast %2 : vector<1x8x256xf32> to vector<8x256xf32>
    %c0_5 = arith.constant 0 : index
    %c0_6 = arith.constant 0 : index
    %4 = vector.load %arg3[%c0_5, %c0_6] : memref<128x32xf32, #tpu.memory_space<vmem>>, vector<128x32xf32>
    %cst = arith.constant dense<0.000000e+00> : vector<128x64xf32>
    %5 = tpu.matmul %4, %1, %cst {dimension_numbers = #tpu.dot_dimension_numbers<[1], [0], [0], [1], [0, 0, 1, 1], [], []>} : vector<128x32xf32>, vector<32x64xf32>, vector<128x64xf32> -> vector<128x64xf32>
    %c0_7 = arith.constant 0 : index
    %c0_8 = arith.constant 0 : index
    %6 = vector.load %arg4[%c0_7, %c0_8] : memref<128x1xf32, #tpu.memory_space<vmem>>, vector<128x1xf32>
    %7 = vector.broadcast %6 : vector<128x1xf32> to vector<128x64xf32>
    %8 = arith.mulf %5, %7 : vector<128x64xf32>
    %c0_9 = arith.constant 0 : index
    %c0_10 = arith.constant 0 : index
    %9 = vector.load %arg5[%c0_9, %c0_10] : memref<128x1xf32, #tpu.memory_space<vmem>>, vector<128x1xf32>
    %10 = vector.broadcast %9 : vector<128x1xf32> to vector<128x64xf32>
    %11 = arith.addf %8, %10 : vector<128x64xf32>
    %cst_11 = arith.constant 0.000000e+00 : f32
    %12 = vector.broadcast %cst_11 : f32 to vector<128x64xf32>
    %13 = arith.maximumf %11, %12 : vector<128x64xf32>
    %c0_12 = arith.constant 0 : index
    %c0_13 = arith.constant 0 : index
    %14 = vector.load %arg6[%c0_12, %c0_13] : memref<128x32xf32, #tpu.memory_space<vmem>>, vector<128x32xf32>
    %cst_14 = arith.constant dense<0.000000e+00> : vector<128x64xf32>
    %15 = tpu.matmul %14, %1, %cst_14 {dimension_numbers = #tpu.dot_dimension_numbers<[1], [0], [0], [1], [0, 0, 1, 1], [], []>} : vector<128x32xf32>, vector<32x64xf32>, vector<128x64xf32> -> vector<128x64xf32>
    %cst_15 = arith.constant dense<0.000000e+00> : vector<128xf32>
    %16 = vector.multi_reduction <add>, %15, %cst_15 [1] : vector<128x64xf32> to vector<128xf32>
    %17 = vector.shape_cast %16 : vector<128xf32> to vector<128x1xf32>
    %cst_16 = arith.constant 6.400000e+01 : f32
    %18 = vector.broadcast %cst_16 : f32 to vector<128x1xf32>
    %19 = arith.divf %17, %18 : vector<128x1xf32>
    %20 = arith.negf %19 : vector<128x1xf32>
    %21 = math.exp %20 : vector<128x1xf32>
    %cst_17 = arith.constant 1.000000e+00 : f32
    %22 = vector.broadcast %cst_17 : f32 to vector<128x1xf32>
    %23 = arith.addf %22, %21 : vector<128x1xf32>
    %24 = arith.divf %22, %23 : vector<128x1xf32>
    %25 = vector.broadcast %24 : vector<128x1xf32> to vector<128x64xf32>
    %26 = arith.mulf %13, %25 : vector<128x64xf32>
    %c0_18 = arith.constant 0 : index
    %c0_19 = arith.constant 0 : index
    %27 = vector.load %arg7[%c0_18, %c0_19] : memref<3x128xf32, #tpu.memory_space<vmem>>, vector<3x128xf32>
    %cst_20 = arith.constant dense<0.000000e+00> : vector<3x64xf32>
    %28 = tpu.matmul %27, %26, %cst_20 {dimension_numbers = #tpu.dot_dimension_numbers<[1], [0], [0], [1], [0, 0, 1, 1], [], []>} : vector<3x128xf32>, vector<128x64xf32>, vector<3x64xf32> -> vector<3x64xf32>
    %c0_21 = arith.constant 0 : index
    %c0_22 = arith.constant 0 : index
    %29 = vector.load %arg8[%c0_21, %c0_22] : memref<3x8xf32, #tpu.memory_space<vmem>>, vector<3x8xf32>
    %cst_23 = arith.constant dense<0.000000e+00> : vector<3x256xf32>
    %30 = tpu.matmul %29, %3, %cst_23 {dimension_numbers = #tpu.dot_dimension_numbers<[1], [0], [0], [1], [0, 0, 1, 1], [], []>} : vector<3x8xf32>, vector<8x256xf32>, vector<3x256xf32> -> vector<3x256xf32>
    %31 = arith.truncf %28 : vector<3x64xf32> to vector<3x64xbf16>
    %c0_24 = arith.constant 0 : index
    %c0_25 = arith.constant 0 : index
    %32 = vector.load %arg10[%c0_24, %c0_25] : memref<64x256xbf16, #tpu.memory_space<vmem>>, vector<64x256xbf16>
    %cst_26 = arith.constant dense<0.000000e+00> : vector<3x256xf32>
    %33 = tpu.matmul %31, %32, %cst_26 {dimension_numbers = #tpu.dot_dimension_numbers<[1], [0], [0], [1], [0, 0, 1, 1], [], []>} : vector<3x64xbf16>, vector<64x256xbf16>, vector<3x256xf32> -> vector<3x256xf32>
    %34 = arith.addf %30, %33 : vector<3x256xf32>
    %c0_27 = arith.constant 0 : index
    %c0_28 = arith.constant 0 : index
    %35 = vector.load %arg9[%c0_27, %c0_28] : memref<3x1xf32, #tpu.memory_space<vmem>>, vector<3x1xf32>
    %36 = vector.broadcast %35 : vector<3x1xf32> to vector<3x256xf32>
    %37 = arith.addf %34, %36 : vector<3x256xf32>
    %38 = arith.truncf %37 : vector<3x256xf32> to vector<3x256xbf16>
    %c0_29 = arith.constant 0 : index
    %c0_30 = arith.constant 0 : index
    %39 = vector.load %arg11[%c0_29, %c0_30] : memref<256x1024xbf16, #tpu.memory_space<vmem>>, vector<256x1024xbf16>
    %cst_31 = arith.constant dense<0.000000e+00> : vector<3x1024xf32>
    %40 = tpu.matmul %38, %39, %cst_31 {dimension_numbers = #tpu.dot_dimension_numbers<[1], [0], [0], [1], [0, 0, 1, 1], [], []>} : vector<3x256xbf16>, vector<256x1024xbf16>, vector<3x1024xf32> -> vector<3x1024xf32>
    %c0_32 = arith.constant 0 : index
    %c0_33 = arith.constant 0 : index
    %c0_34 = arith.constant 0 : index
    %41 = vector.load %arg12[%c0_32, %c0_33, %c0_34] : memref<1x3x1024xf32, #tpu.memory_space<vmem>>, vector<1x3x1024xf32>
    %42 = vector.shape_cast %41 : vector<1x3x1024xf32> to vector<3x1024xf32>
    %43 = vector.shape_cast %40 : vector<3x1024xf32> to vector<1x3x1024xf32>
    tpu.vector_store %arg12[%c0_32, %c0_33, %c0_34], %43 {strides = array<i32>} : memref<1x3x1024xf32, #tpu.memory_space<vmem>>, vector<1x3x1024xf32>,
    return
  }
  func.func @transform_0(%arg0: i32) -> (i32, i32, i32) {
    %c0_i32 = arith.constant 0 : i32
    %c0_i32_0 = arith.constant 0 : i32
    %c0_i32_1 = arith.constant 0 : i32
    return %arg0, %c0_i32, %c0_i32_0 : i32, i32, i32
  }
  func.func @transform_1(%arg0: i32) -> (i32, i32, i32) {
    %c0_i32 = arith.constant 0 : i32
    %c0_i32_0 = arith.constant 0 : i32
    %c0_i32_1 = arith.constant 0 : i32
    return %arg0, %c0_i32, %c0_i32_0 : i32, i32, i32
  }
  func.func @transform_2(%arg0: i32) -> (i32, i32) {
    %c0_i32 = arith.constant 0 : i32
    %c0_i32_0 = arith.constant 0 : i32
    %c0_i32_1 = arith.constant 0 : i32
    return %c0_i32, %c0_i32_0 : i32, i32
  }
  func.func @transform_3(%arg0: i32) -> (i32, i32) {
    %c0_i32 = arith.constant 0 : i32
    %c0_i32_0 = arith.constant 0 : i32
    %c0_i32_1 = arith.constant 0 : i32
    return %c0_i32, %c0_i32_0 : i32, i32
  }
  func.func @transform_4(%arg0: i32) -> (i32, i32) {
    %c0_i32 = arith.constant 0 : i32
    %c0_i32_0 = arith.constant 0 : i32
    %c0_i32_1 = arith.constant 0 : i32
    return %c0_i32, %c0_i32_0 : i32, i32
  }
  func.func @transform_5(%arg0: i32) -> (i32, i32) {
    %c0_i32 = arith.constant 0 : i32
    %c0_i32_0 = arith.constant 0 : i32
    %c0_i32_1 = arith.constant 0 : i32
    return %c0_i32, %c0_i32_0 : i32, i32
  }
  func.func @transform_6(%arg0: i32) -> (i32, i32) {
    %c0_i32 = arith.constant 0 : i32
    %c0_i32_0 = arith.constant 0 : i32
    %c0_i32_1 = arith.constant 0 : i32
    return %c0_i32, %c0_i32_0 : i32, i32
  }
  func.func @transform_7(%arg0: i32) -> (i32, i32) {
    %c0_i32 = arith.constant 0 : i32
    %c0_i32_0 = arith.constant 0 : i32
    %c0_i32_1 = arith.constant 0 : i32
    return %c0_i32, %c0_i32_0 : i32, i32
  }
  func.func @transform_8(%arg0: i32) -> (i32, i32) {
    %c0_i32 = arith.constant 0 : i32
    %c0_i32_0 = arith.constant 0 : i32
    %c0_i32_1 = arith.constant 0 : i32
    return %c0_i32, %c0_i32_0 : i32, i32
  }
  func.func @transform_9(%arg0: i32) -> (i32, i32) {
    %c0_i32 = arith.constant 0 : i32
    %c0_i32_0 = arith.constant 0 : i32
    %c0_i32_1 = arith.constant 0 : i32
    return %c0_i32, %c0_i32_0 : i32, i32
  }
  func.func @transform_10(%arg0: i32) -> (i32, i32) {
    %c0_i32 = arith.constant 0 : i32
    %c0_i32_0 = arith.constant 0 : i32
    %c0_i32_1 = arith.constant 0 : i32
    return %c0_i32, %c0_i32_0 : i32, i32
  }
  func.func @transform_11(%arg0: i32) -> (i32, i32, i32) {
    %c0_i32 = arith.constant 0 : i32
    %c0_i32_0 = arith.constant 0 : i32
    %c0_i32_1 = arith.constant 0 : i32
    return %arg0, %c0_i32, %c0_i32_0 : i32, i32, i32
  }
}

</mosaic_0001>

<llo_original>
// kernel: lraspp_forward.1
$region0: #{lraspp_forward.1}
  #allocation0 [shape = 'u32[]', space=smem, size = 0x4, offset = 0x4, fixed_abs, tag = 'smem constant byte address 0x4 - core index']
  #allocation1 [shape = 'u32[144,128]{1,0:T(1,128)}', space=vmem, size = 0x12000, scoped, tag = 'internal scratch']
  %s0 = inlined_call_operand.vmem [shape: f32[2,32,64], index: 0, kind: input, shape index: {}]
  %s1 = inlined_call_operand.vmem [shape: f32[2,8,256], index: 1, kind: input, shape index: {}]
  %s2 = inlined_call_operand.vmem [shape: f32[128,32], index: 2, kind: input, shape index: {}]
  %s3 = inlined_call_operand.vmem [shape: f32[128,1], index: 3, kind: input, shape index: {}]
  %s4 = inlined_call_operand.vmem [shape: f32[128,1], index: 4, kind: input, shape index: {}]
  %s5 = inlined_call_operand.vmem [shape: f32[128,32], index: 5, kind: input, shape index: {}]
  %s6 = inlined_call_operand.vmem [shape: f32[3,128], index: 6, kind: input, shape index: {}]
  %s7 = inlined_call_operand.vmem [shape: f32[3,8], index: 7, kind: input, shape index: {}]
  %s8 = inlined_call_operand.vmem [shape: f32[3,1], index: 8, kind: input, shape index: {}]
  %s9 = inlined_call_operand.vmem [shape: bf16[64,256], index: 9, kind: input, shape index: {}]
  %s10 = inlined_call_operand.vmem [shape: bf16[256,1024], index: 10, kind: input, shape index: {}]
  %s11 = inlined_call_operand.vmem [shape: f32[2,3,1024], index: 11, kind: output, shape index: {}]
  %s12 = sld [smem:[#allocation0]]
  $region77: #{lraspp_forward.1} parent=0
    _
  %s14 = ssub.s32 1, %s12
  %s15 = scalar_select 0, %s14, %s12
  loop: start=0, step=1, limit=4
  $region2: #{lraspp_forward.1} parent=0 // loop_pre_header
    _
  $region3: #{lraspp_forward.1} parent=0 // loop_header
    %s17 = sphi 0, %s21
    %p18 = scmp.ge.s32.totalorder %s17, 4
    %s27 = sphi 0, %s29
    %s30 = sphi 0, %s27
    %s31 = sphi 0, %s30
    %s47 = sphi 0, %s31
    %s53 = sphi 0, %s55
    %s56 = sphi 0, %s53
    %s57 = sphi 0, %s56
    %s73 = sphi 0, %s57
    %s77 = sphi 0, %s77
    %s79 = sphi 0, %s77
    %s80 = sphi 0, %s79
    %s94 = sphi 0, %s80
    %s98 = sphi 0, %s98
    %s100 = sphi 0, %s98
    %s101 = sphi 0, %s100
    %s115 = sphi 0, %s101
    %s119 = sphi 0, %s119
    %s121 = sphi 0, %s119
    %s122 = sphi 0, %s121
    %s136 = sphi 0, %s122
    %s140 = sphi 0, %s140
    %s142 = sphi 0, %s140
    %s143 = sphi 0, %s142
    %s157 = sphi 0, %s143
    %s161 = sphi 0, %s161
    %s163 = sphi 0, %s161
    %s164 = sphi 0, %s163
    %s178 = sphi 0, %s164
    %s182 = sphi 0, %s182
    %s184 = sphi 0, %s182
    %s185 = sphi 0, %s184
    %s199 = sphi 0, %s185
    %s203 = sphi 0, %s203
    %s205 = sphi 0, %s203
    %s206 = sphi 0, %s205
    %s220 = sphi 0, %s206
    %s224 = sphi 0, %s224
    %s226 = sphi 0, %s224
    %s227 = sphi 0, %s226
    %s241 = sphi 0, %s227
    %s245 = sphi 0, %s245
    %s247 = sphi 0, %s245
    %s248 = sphi 0, %s247
    %s262 = sphi 0, %s248
    %s268 = sphi 0, %s270
    %s271 = sphi 0, %s268
    %s272 = sphi 0, %s271
    %s288 = sphi 0, %s272
  $region4: #{lraspp_forward.1} parent=0 // loop_header_branch
    %20 = sbr.rel (%p18) target = $region8
  $region5: #{lraspp_forward.1} parent=0 // loop_body
    %s22 = ssub.s32 %s17, 1
    %s23 = ssub.s32 %s17, 2
    %s24 = sadd.s32 %s17, 1
    %s25 = ssub.s32 %s17, %s24
    %p26 = scmp.eq.s32.totalorder %s25, 0
    %s28 = sadd.s32 %s27, 1
    %s29 = scalar_select %p26, %s27, %s28
    %p32 = pneg %p26
    %p33 = scmp.eq.s32.totalorder %s17, 1
    %p34 = por %p32, %p33
    %p35 = scmp.ne.s32.totalorder %s27, %s30
    %p36 = scmp.eq.s32.totalorder %s17, 0
    %p37 = por %p35, %p36
    %p38 = scmp.ne.s32.totalorder %s27, %s30
    %p39 = scmp.eq.s32.totalorder %s22, 1
    %p40 = por %p38, %p39
    %p41 = scmp.ne.s32.totalorder %s30, %s31
    %p42 = scmp.eq.s32.totalorder %s22, 0
    %p43 = por %p41, %p42
    %p44 = scmp.ne.s32.totalorder %s30, %s31
    %p45 = scmp.eq.s32.totalorder %s23, 1
    %p46 = por %p44, %p45
    %p48 = scmp.ne.s32.totalorder %s31, %s47
    %p49 = scmp.eq.s32.totalorder %s23, 0
    %p50 = por %p48, %p49
    %s51 = ssub.s32 %s17, %s24
    %p52 = scmp.eq.s32.totalorder %s51, 0
    %s54 = sadd.s32 %s53, 1
    %s55 = scalar_select %p52, %s53, %s54
    %p58 = pneg %p52
    %p59 = scmp.eq.s32.totalorder %s17, 1
    %p60 = por %p58, %p59
    %p61 = scmp.ne.s32.totalorder %s53, %s56
    %p62 = scmp.eq.s32.totalorder %s17, 0
    %p63 = por %p61, %p62
    %p64 = scmp.ne.s32.totalorder %s53, %s56
    %p65 = scmp.eq.s32.totalorder %s22, 1
    %p66 = por %p64, %p65
    %p67 = scmp.ne.s32.totalorder %s56, %s57
    %p68 = scmp.eq.s32.totalorder %s22, 0
    %p69 = por %p67, %p68
    %p70 = scmp.ne.s32.totalorder %s56, %s57
    %p71 = scmp.eq.s32.totalorder %s23, 1
    %p72 = por %p70, %p71
    %p74 = scmp.ne.s32.totalorder %s57, %s73
    %p75 = scmp.eq.s32.totalorder %s23, 0
    %p76 = por %p74, %p75
    %s78 = sadd.s32 %s77, 1
    %p81 = scmp.eq.s32.totalorder %s17, 1
    %p82 = scmp.ne.s32.totalorder %s77, %s79
    %p83 = scmp.eq.s32.totalorder %s17, 0
    %p84 = por %p82, %p83
    %p85 = scmp.ne.s32.totalorder %s77, %s79
    %p86 = scmp.eq.s32.totalorder %s22, 1
    %p87 = por %p85, %p86
    %p88 = scmp.ne.s32.totalorder %s79, %s80
    %p89 = scmp.eq.s32.totalorder %s22, 0
    %p90 = por %p88, %p89
    %p91 = scmp.ne.s32.totalorder %s79, %s80
    %p92 = scmp.eq.s32.totalorder %s23, 1
    %p93 = por %p91, %p92
    %p95 = scmp.ne.s32.totalorder %s80, %s94
    %p96 = scmp.eq.s32.totalorder %s23, 0
    %p97 = por %p95, %p96
    %s99 = sadd.s32 %s98, 1
    %p102 = scmp.eq.s32.totalorder %s17, 1
    %p103 = scmp.ne.s32.totalorder %s98, %s100
    %p104 = scmp.eq.s32.totalorder %s17, 0
    %p105 = por %p103, %p104
    %p106 = scmp.ne.s32.totalorder %s98, %s100
    %p107 = scmp.eq.s32.totalorder %s22, 1
    %p108 = por %p106, %p107
    %p109 = scmp.ne.s32.totalorder %s100, %s101
    %p110 = scmp.eq.s32.totalorder %s22, 0
    %p111 = por %p109, %p110
    %p112 = scmp.ne.s32.totalorder %s100, %s101
    %p113 = scmp.eq.s32.totalorder %s23, 1
    %p114 = por %p112, %p113
    %p116 = scmp.ne.s32.totalorder %s101, %s115
    %p117 = scmp.eq.s32.totalorder %s23, 0
    %p118 = por %p116, %p117
    %s120 = sadd.s32 %s119, 1
    %p123 = scmp.eq.s32.totalorder %s17, 1
    %p124 = scmp.ne.s32.totalorder %s119, %s121
    %p125 = scmp.eq.s32.totalorder %s17, 0
    %p126 = por %p124, %p125
    %p127 = scmp.ne.s32.totalorder %s119, %s121
    %p128 = scmp.eq.s32.totalorder %s22, 1
    %p129 = por %p127, %p128
    %p130 = scmp.ne.s32.totalorder %s121, %s122
    %p131 = scmp.eq.s32.totalorder %s22, 0
    %p132 = por %p130, %p131
    %p133 = scmp.ne.s32.totalorder %s121, %s122
    %p134 = scmp.eq.s32.totalorder %s23, 1
    %p135 = por %p133, %p134
    %p137 = scmp.ne.s32.totalorder %s122, %s136
    %p138 = scmp.eq.s32.totalorder %s23, 0
    %p139 = por %p137, %p138
    %s141 = sadd.s32 %s140, 1
    %p144 = scmp.eq.s32.totalorder %s17, 1
    %p145 = scmp.ne.s32.totalorder %s140, %s142
    %p146 = scmp.eq.s32.totalorder %s17, 0
    %p147 = por %p145, %p146
    %p148 = scmp.ne.s32.totalorder %s140, %s142
    %p149 = scmp.eq.s32.totalorder %s22, 1
    %p150 = por %p148, %p149
    %p151 = scmp.ne.s32.totalorder %s142, %s143
    %p152 = scmp.eq.s32.totalorder %s22, 0
    %p153 = por %p151, %p152
    %p154 = scmp.ne.s32.totalorder %s142, %s143
    %p155 = scmp.eq.s32.totalorder %s23, 1
    %p156 = por %p154, %p155
    %p158 = scmp.ne.s32.totalorder %s143, %s157
    %p159 = scmp.eq.s32.totalorder %s23, 0
    %p160 = por %p158, %p159
    %s162 = sadd.s32 %s161, 1
    %p165 = scmp.eq.s32.totalorder %s17, 1
    %p166 = scmp.ne.s32.totalorder %s161, %s163
    %p167 = scmp.eq.s32.totalorder %s17, 0
    %p168 = por %p166, %p167
    %p169 = scmp.ne.s32.totalorder %s161, %s163
    %p170 = scmp.eq.s32.totalorder %s22, 1
    %p171 = por %p169, %p170
    %p172 = scmp.ne.s32.totalorder %s163, %s164
    %p173 = scmp.eq.s32.totalorder %s22, 0
    %p174 = por %p172, %p173
    %p175 = scmp.ne.s32.totalorder %s163, %s164
    %p176 = scmp.eq.s32.totalorder %s23, 1
    %p177 = por %p175, %p176
    %p179 = scmp.ne.s32.totalorder %s164, %s178
    %p180 = scmp.eq.s32.totalorder %s23, 0
    %p181 = por %p179, %p180
    %s183 = sadd.s32 %s182, 1
    %p186 = scmp.eq.s32.totalorder %s17, 1
    %p187 = scmp.ne.s32.totalorder %s182, %s184
    %p188 = scmp.eq.s32.totalorder %s17, 0
    %p189 = por %p187, %p188
    %p190 = scmp.ne.s32.totalorder %s182, %s184
    %p191 = scmp.eq.s32.totalorder %s22, 1
    %p192 = por %p190, %p191
    %p193 = scmp.ne.s32.totalorder %s184, %s185
    %p194 = scmp.eq.s32.totalorder %s22, 0
    %p195 = por %p193, %p194
    %p196 = scmp.ne.s32.totalorder %s184, %s185
    %p197 = scmp.eq.s32.totalorder %s23, 1
    %p198 = por %p196, %p197
    %p200 = scmp.ne.s32.totalorder %s185, %s199
    %p201 = scmp.eq.s32.totalorder %s23, 0
    %p202 = por %p200, %p201
    %s204 = sadd.s32 %s203, 1
    %p207 = scmp.eq.s32.totalorder %s17, 1
    %p208 = scmp.ne.s32.totalorder %s203, %s205
    %p209 = scmp.eq.s32.totalorder %s17, 0
    %p210 = por %p208, %p209
    %p211 = scmp.ne.s32.totalorder %s203, %s205
    %p212 = scmp.eq.s32.totalorder %s22, 1
    %p213 = por %p211, %p212
    %p214 = scmp.ne.s32.totalorder %s205, %s206
    %p215 = scmp.eq.s32.totalorder %s22, 0
    %p216 = por %p214, %p215
    %p217 = scmp.ne.s32.totalorder %s205, %s206
    %p218 = scmp.eq.s32.totalorder %s23, 1
    %p219 = por %p217, %p218
    %p221 = scmp.ne.s32.totalorder %s206, %s220
    %p222 = scmp.eq.s32.totalorder %s23, 0
    %p223 = por %p221, %p222
    %s225 = sadd.s32 %s224, 1
    %p228 = scmp.eq.s32.totalorder %s17, 1
    %p229 = scmp.ne.s32.totalorder %s224, %s226
    %p230 = scmp.eq.s32.totalorder %s17, 0
    %p231 = por %p229, %p230
    %p232 = scmp.ne.s32.totalorder %s224, %s226
    %p233 = scmp.eq.s32.totalorder %s22, 1
    %p234 = por %p232, %p233
    %p235 = scmp.ne.s32.totalorder %s226, %s227
    %p236 = scmp.eq.s32.totalorder %s22, 0
    %p237 = por %p235, %p236
    %p238 = scmp.ne.s32.totalorder %s226, %s227
    %p239 = scmp.eq.s32.totalorder %s23, 1
    %p240 = por %p238, %p239
    %p242 = scmp.ne.s32.totalorder %s227, %s241
    %p243 = scmp.eq.s32.totalorder %s23, 0
    %p244 = por %p242, %p243
    %s246 = sadd.s32 %s245, 1
    %p249 = scmp.eq.s32.totalorder %s17, 1
    %p250 = scmp.ne.s32.totalorder %s245, %s247
    %p251 = scmp.eq.s32.totalorder %s17, 0
    %p252 = por %p250, %p251
    %p253 = scmp.ne.s32.totalorder %s245, %s247
    %p254 = scmp.eq.s32.totalorder %s22, 1
    %p255 = por %p253, %p254
    %p256 = scmp.ne.s32.totalorder %s247, %s248
    %p257 = scmp.eq.s32.totalorder %s22, 0
    %p258 = por %p256, %p257
    %p259 = scmp.ne.s32.totalorder %s247, %s248
    %p260 = scmp.eq.s32.totalorder %s23, 1
    %p261 = por %p259, %p260
    %p263 = scmp.ne.s32.totalorder %s248, %s262
    %p264 = scmp.eq.s32.totalorder %s23, 0
    %p265 = por %p263, %p264
    %s266 = ssub.s32 %s17, %s24
    %p267 = scmp.eq.s32.totalorder %s266, 0
    %s269 = sadd.s32 %s268, 1
    %s270 = scalar_select %p267, %s268, %s269
    %p273 = pneg %p267
    %p274 = scmp.eq.s32.totalorder %s17, 1
    %p275 = por %p273, %p274
    %p276 = scmp.ne.s32.totalorder %s268, %s271
    %p277 = scmp.eq.s32.totalorder %s17, 0
    %p278 = por %p276, %p277
    %p279 = scmp.ne.s32.totalorder %s268, %s271
    %p280 = scmp.eq.s32.totalorder %s22, 1
    %p281 = por %p279, %p280
    %p282 = scmp.ne.s32.totalorder %s271, %s272
    %p283 = scmp.eq.s32.totalorder %s22, 0
    %p284 = por %p282, %p283
    %p285 = scmp.ne.s32.totalorder %s271, %s272
    %p286 = scmp.eq.s32.totalorder %s23, 1
    %p287 = por %p285, %p286
    %p289 = scmp.ne.s32.totalorder %s272, %s288
    %p290 = scmp.eq.s32.totalorder %s23, 0
    %p291 = por %p289, %p290
    %p292 = scmp.le.s32.totalorder 1, %s17
    %p293 = scmp.lt.s32.totalorder %s17, 3
    %p294 = pnand %p292, %p293
    %p295 = pneg %p294
    // Predicated region
    $region9: #{lraspp_forward.1} parent=5 // pred_check
      _
    $region10: #{lraspp_forward.1} parent=5 // pred_check_branch
      %297 = sbr.rel (%p294) target = $region12
    $region11: #{lraspp_forward.1} parent=5 // pred_region
      %s298 = ssub.s32 %s17, 1
      // Predicated region
      $region13: #{lraspp_forward.1} parent=11 // pred_check
        %p299 = pneg %p90
      $region14: #{lraspp_forward.1} parent=11 // pred_check_branch
        %301 = sbr.rel (%p299) target = $region16
      $region15: #{lraspp_forward.1} parent=11 // pred_region
        _
      $region16: #{lraspp_forward.1} parent=11 // pred_fallthru
        _
      // Predicated region
      $region17: #{lraspp_forward.1} parent=11 // pred_check
        %p302 = pneg %p111
      $region18: #{lraspp_forward.1} parent=11 // pred_check_branch
        %304 = sbr.rel (%p302) target = $region20
      $region19: #{lraspp_forward.1} parent=11 // pred_region
        _
      $region20: #{lraspp_forward.1} parent=11 // pred_fallthru
        _
      // Predicated region
      $region21: #{lraspp_forward.1} parent=11 // pred_check
        %p305 = pneg %p132
      $region22: #{lraspp_forward.1} parent=11 // pred_check_branch
        %307 = sbr.rel (%p305) target = $region24
      $region23: #{lraspp_forward.1} parent=11 // pred_region
        _
      $region24: #{lraspp_forward.1} parent=11 // pred_fallthru
        _
      // Predicated region
      $region25: #{lraspp_forward.1} parent=11 // pred_check
        %p308 = pneg %p153
      $region26: #{lraspp_forward.1} parent=11 // pred_check_branch
        %310 = sbr.rel (%p308) target = $region28
      $region27: #{lraspp_forward.1} parent=11 // pred_region
        _
      $region28: #{lraspp_forward.1} parent=11 // pred_fallthru
        _
      // Predicated region
      $region29: #{lraspp_forward.1} parent=11 // pred_check
        %p311 = pneg %p174
      $region30: #{lraspp_forward.1} parent=11 // pred_check_branch
        %313 = sbr.rel (%p311) target = $region32
      $region31: #{lraspp_forward.1} parent=11 // pred_region
        _
      $region32: #{lraspp_forward.1} parent=11 // pred_fallthru
        _
      // Predicated region
      $region33: #{lraspp_forward.1} parent=11 // pred_check
        %p314 = pneg %p195
      $region34: #{lraspp_forward.1} parent=11 // pred_check_branch
        %316 = sbr.rel (%p314) target = $region36
      $region35: #{lraspp_forward.1} parent=11 // pred_region
        _
      $region36: #{lraspp_forward.1} parent=11 // pred_fallthru
        _
      // Predicated region
      $region37: #{lraspp_forward.1} parent=11 // pred_check
        %p317 = pneg %p216
      $region38: #{lraspp_forward.1} parent=11 // pred_check_branch
        %319 = sbr.rel (%p317) target = $region40
      $region39: #{lraspp_forward.1} parent=11 // pred_region
        _
      $region40: #{lraspp_forward.1} parent=11 // pred_fallthru
        _
      // Predicated region
      $region41: #{lraspp_forward.1} parent=11 // pred_check
        %p320 = pneg %p237
      $region42: #{lraspp_forward.1} parent=11 // pred_check_branch
        %322 = sbr.rel (%p320) target = $region44
      $region43: #{lraspp_forward.1} parent=11 // pred_region
        _
      $region44: #{lraspp_forward.1} parent=11 // pred_fallthru
        _
      // Predicated region
      $region45: #{lraspp_forward.1} parent=11 // pred_check
        %p323 = pneg %p258
      $region46: #{lraspp_forward.1} parent=11 // pred_check_branch
        %325 = sbr.rel (%p323) target = $region48
      $region47: #{lraspp_forward.1} parent=11 // pred_region
        _
      $region48: #{lraspp_forward.1} parent=11 // pred_fallthru
        _
    $region12: #{lraspp_forward.1} parent=5 // pred_fallthru
      _
    %p326 = scmp.lt.s32.totalorder %s17, 2
    // Predicated region
    $region49: #{lraspp_forward.1} parent=5 // pred_check
      %p327 = pneg %p326
    $region50: #{lraspp_forward.1} parent=5 // pred_check_branch
      %329 = sbr.rel (%p327) target = $region52
    $region51: #{lraspp_forward.1} parent=5 // pred_region
      // Predicated region
      $region53: #{lraspp_forward.1} parent=51 // pred_check
        %p330 = pneg %p37
      $region54: #{lraspp_forward.1} parent=51 // pred_check_branch
        %332 = sbr.rel (%p330) target = $region56
      $region55: #{lraspp_forward.1} parent=51 // pred_region
        %p333 = scmp.lt.s32.totalorder %s17, 1
        %s334 = scalar_select %p333, %s17, 1
        %s335 = smul.addr %s334, 4
        %s336 = smul.addr %s335, 8
        %s337 = scalar_lea.vmem %s0, %s336
      $region56: #{lraspp_forward.1} parent=51 // pred_fallthru
        _
      // Predicated region
      $region57: #{lraspp_forward.1} parent=51 // pred_check
        %p338 = pneg %p63
      $region58: #{lraspp_forward.1} parent=51 // pred_check_branch
        %340 = sbr.rel (%p338) target = $region60
      $region59: #{lraspp_forward.1} parent=51 // pred_region
        %p341 = scmp.lt.s32.totalorder %s17, 1
        %s342 = scalar_select %p341, %s17, 1
        %s343 = smul.addr %s342, 2
        %s344 = smul.addr %s343, 8
        %s345 = scalar_lea.vmem %s1, %s344
      $region60: #{lraspp_forward.1} parent=51 // pred_fallthru
        _
    $region52: #{lraspp_forward.1} parent=5 // pred_fallthru
      _
    %p346 = scmp.le.s32.totalorder 1, %s17
    %p347 = scmp.lt.s32.totalorder %s17, 3
    %p348 = pnand %p346, %p347
    %p349 = pneg %p348
    // Predicated region
    $region61: #{lraspp_forward.1} parent=5 // pred_check
      _
    $region62: #{lraspp_forward.1} parent=5 // pred_check_branch
      %351 = sbr.rel (%p348) target = $region64
    $region63: #{lraspp_forward.1} parent=5 // pred_region
      %s352 = ssub.s32 %s17, 1
      %p353 = scmp.lt.s32.totalorder %s22, 1
      %s354 = scalar_select %p353, %s22, 1
      %s355 = smul.addr %s354, 4
      %s356 = smul.addr %s355, 8
      %s357 = scalar_lea.vmem %s0, %s356
      %p358 = pneg %p43
      %p359 = pneg %p40
      %p360 = scmp.lt.s32.totalorder %s22, 1
      %s361 = scalar_select %p360, %s22, 1
      %s362 = smul.addr %s361, 2
      %s363 = smul.addr %s362, 8
      %s364 = scalar_lea.vmem %s1, %s363
      %p365 = pneg %p69
      %p366 = pneg %p66
      %p367 = pneg %p90
      %p368 = pneg %p87
      %p369 = pneg %p111
      %p370 = pneg %p108
      %p371 = pneg %p132
      %p372 = pneg %p129
      %p373 = pneg %p153
      %p374 = pneg %p150
      %p375 = pneg %p174
      %p376 = pneg %p171
      %p377 = pneg %p195
      %p378 = pneg %p192
      %p379 = pneg %p216
      %p380 = pneg %p213
      %p381 = pneg %p237
      %p382 = pneg %p234
      %p383 = pneg %p258
      %p384 = pneg %p255
      %p385 = pneg %p284
      %p386 = pneg %p281
      %p387 = scmp.lt.s32.totalorder %s22, 1
      %s388 = scalar_select %p387, %s22, 1
      %s389 = smul.addr %s388, 8
      %s390 = smul.addr %s389, 4
      %s391 = scalar_lea.vmem %s11, %s390
      %p392 = scmp.lt.s32.totalorder %s22, 1
      %s393 = scalar_select %p392, %s22, 1
      %s394 = smul.addr %s393, 4
      %s395 = smul.addr %s394, 8
      %s396 = scalar_lea.vmem %s0, %s395
      %p397 = scmp.lt.s32.totalorder %s22, 1
      %s398 = scalar_select %p397, %s22, 1
      %s399 = smul.addr %s398, 2
      %s400 = smul.addr %s399, 8
      %s401 = scalar_lea.vmem %s1, %s400
      %p402 = scmp.lt.s32.totalorder %s22, 1
      %s403 = scalar_select %p402, %s22, 1
      %s404 = smul.addr %s403, 8
      %s405 = smul.addr %s404, 4
      %s406 = scalar_lea.vmem %s11, %s405
      %v408 = vld [vmem:[%s396] sm:$0xff]
      %v409 = vld [vmem:[%s396 + $0x8] sm:$0xff]
      %v410 = vld [vmem:[%s396 + $0x10] sm:$0xff]
      %v411 = vld [vmem:[%s396 + $0x18] sm:$0xff]
      %v412 = vld [vmem:[%s401] sm:$0xff]
      %v413 = vld [vmem:[%s401 + $0x8] sm:$0xff]
      %v414 = vld [vmem:[%s2] sm:$0xff]
      %v415 = vld [vmem:[%s2 + $0x8] sm:$0xff]
      %v416 = vld [vmem:[%s2 + $0x10] sm:$0xff]
      %v417 = vld [vmem:[%s2 + $0x18] sm:$0xff]
      %v418 = vld [vmem:[%s2 + $0x20] sm:$0xff]
      %v419 = vld [vmem:[%s2 + $0x28] sm:$0xff]
      %v420 = vld [vmem:[%s2 + $0x30] sm:$0xff]
      %v421 = vld [vmem:[%s2 + $0x38] sm:$0xff]
      %v422 = vld [vmem:[%s2 + $0x40] sm:$0xff]
      %v423 = vld [vmem:[%s2 + $0x48] sm:$0xff]
      %v424 = vld [vmem:[%s2 + $0x50] sm:$0xff]
      %v425 = vld [vmem:[%s2 + $0x58] sm:$0xff]
      %v426 = vld [vmem:[%s2 + $0x60] sm:$0xff]
      %v427 = vld [vmem:[%s2 + $0x68] sm:$0xff]
      %v428 = vld [vmem:[%s2 + $0x70] sm:$0xff]
      %v429 = vld [vmem:[%s2 + $0x78] sm:$0xff]
      %vm430 = vcmask 261120
      %v432 = vsel %vm430, %v414, 0
      %v435 = vsel %vm430, %v415, 0
      %v438 = vsel %vm430, %v416, 0
      %v441 = vsel %vm430, %v417, 0
      %v444 = vsel %vm430, %v418, 0
      %v447 = vsel %vm430, %v419, 0
      %v450 = vsel %vm430, %v420, 0
      %v453 = vsel %vm430, %v421, 0
      %v456 = vsel %vm430, %v422, 0
      %v459 = vsel %vm430, %v423, 0
      %v462 = vsel %vm430, %v424, 0
      %v465 = vsel %vm430, %v425, 0
      %v468 = vsel %vm430, %v426, 0
      %v471 = vsel %vm430, %v427, 0
      %v474 = vsel %vm430, %v428, 0
      %v477 = vsel %vm430, %v429, 0
      %479 = vmatprep.subr.mxu0 0.0
      %480 = vmatpush1.msra.mxu0 %v408
      %481 = vmatprep.subr.mxu0 0.0
      %482 = vmatpush1.msra.mxu0 %v409
      %483 = vmatprep.subr.mxu0 0.0
      %484 = vmatpush1.msra.mxu0 %v410
      %485 = vmatprep.subr.mxu0 0.0
      %486 = vmatpush1.msra.mxu0 %v411
      %487 = vmatprep.subr.mxu0 0.0
      %488 = vmatpush1.msra.mxu0 0.0
      %489 = vmatprep.subr.mxu0 0.0
      %490 = vmatpush1.msra.mxu0 0.0
      %491 = vmatprep.subr.mxu0 0.0
      %492 = vmatpush1.msra.mxu0 0.0
      %493 = vmatprep.subr.mxu0 0.0
      %494 = vmatpush1.msra.mxu0 0.0
      %495 = vmatprep.subr.mxu0 0.0
      %496 = vmatpush1.msra.mxu0 0.0
      %497 = vmatprep.subr.mxu0 0.0
      %498 = vmatpush1.msra.mxu0 0.0
      %499 = vmatprep.subr.mxu0 0.0
      %500 = vmatpush1.msra.mxu0 0.0
      %501 = vmatprep.subr.mxu0 0.0
      %502 = vmatpush1.msra.mxu0 0.0
      %503 = vmatprep.subr.mxu0 0.0
      %504 = vmatpush1.msra.mxu0 0.0
      %505 = vmatprep.subr.mxu0 0.0
      %506 = vmatpush1.msra.mxu0 0.0
      %507 = vmatprep.subr.mxu0 0.0
      %508 = vmatpush1.msra.mxu0 0.0
      %509 = vmatprep.subr.mxu0 0.0
      %510 = vmatpush1.msra.mxu0 0.0
      %511 = vmatprep.subr.mxu0 0.0
      %512 = vmatpush1.msra.mxu0 0.0
      %513 = vmatprep.subr.mxu0 0.0
      %514 = vmatpush1.msra.mxu0 0.0
      %515 = vmatprep.subr.mxu0 0.0
      %516 = vmatpush1.msra.mxu0 0.0
      %517 = vmatprep.subr.mxu0 0.0
      %518 = vmatpush1.msra.mxu0 0.0
      %519 = vmatprep.subr.mxu0 0.0
      %520 = vmatpush1.msra.mxu0 0.0
      %521 = vmatprep.subr.mxu0 0.0
      %522 = vmatpush1.msra.mxu0 0.0
      %523 = vmatprep.subr.mxu0 0.0
      %524 = vmatpush1.msra.mxu0 0.0
      %525 = vmatprep.subr.mxu0 0.0
      %526 = vmatpush1.msra.mxu0 0.0
      %527 = vmatprep.subr.mxu0 0.0
      %528 = vmatpush1.msra.mxu0 0.0
      %529 = vmatprep.subr.mxu0 0.0
      %530 = vmatpush1.msra.mxu0 0.0
      %531 = vmatprep.subr.mxu0 0.0
      %532 = vmatpush1.msra.mxu0 0.0
      %533 = vmatprep.subr.mxu0 0.0
      %534 = vmatpush1.msra.mxu0 0.0
      %535 = vmatprep.subr.mxu0 0.0
      %536 = vmatpush1.msra.mxu0 0.0
      %537 = vmatprep.subr.mxu0 0.0
      %538 = vmatpush1.msra.mxu0 0.0
      %539 = vmatprep.subr.mxu0 0.0
      %540 = vmatpush1.msra.mxu0 0.0
      %541 = vmatprep.subr.mxu0 0.0
      %542 = vmatpush1.msra.mxu0 0.0
      %543 = vmatprep.mubr.f32.mxu0 0.0
      %544 = vmatmul.mubr.f32.gmra.mrb[0].mxu0 %v432
      %v545 = vpop.f32.mrb[0].mxu0
      %v546 = vadd.f32 0.0, %v545
      %v547 = vpop.f32.mrb[0].mxu0
      %548 = vmatprep.mubr.f32.mxu0 0.0
      %549 = vmatmul.mubr.f32.gmra.mrb[0].mxu0 %v435
      %v550 = vpop.f32.mrb[0].mxu0
      %v551 = vadd.f32 0.0, %v550
      %v552 = vpop.f32.mrb[0].mxu0
      %553 = vmatprep.mubr.f32.mxu0 0.0
      %554 = vmatmul.mubr.f32.gmra.mrb[0].mxu0 %v438
      %v555 = vpop.f32.mrb[0].mxu0
      %v556 = vadd.f32 0.0, %v555
      %v557 = vpop.f32.mrb[0].mxu0
      %558 = vmatprep.mubr.f32.mxu0 0.0
      %559 = vmatmul.mubr.f32.gmra.mrb[0].mxu0 %v441
      %v560 = vpop.f32.mrb[0].mxu0
      %v561 = vadd.f32 0.0, %v560
      %v562 = vpop.f32.mrb[0].mxu0
      %563 = vmatprep.mubr.f32.mxu0 0.0
      %564 = vmatmul.mubr.f32.gmra.mrb[0].mxu0 %v444
      %v565 = vpop.f32.mrb[0].mxu0
      %v566 = vadd.f32 0.0, %v565
      %v567 = vpop.f32.mrb[0].mxu0
      %568 = vmatprep.mubr.f32.mxu0 0.0
      %569 = vmatmul.mubr.f32.gmra.mrb[0].mxu0 %v447
      %v570 = vpop.f32.mrb[0].mxu0
      %v571 = vadd.f32 0.0, %v570
      %v572 = vpop.f32.mrb[0].mxu0
      %573 = vmatprep.mubr.f32.mxu0 0.0
      %574 = vmatmul.mubr.f32.gmra.mrb[0].mxu0 %v450
      %v575 = vpop.f32.mrb[0].mxu0
      %v576 = vadd.f32 0.0, %v575
      %v577 = vpop.f32.mrb[0].mxu0
      %578 = vmatprep.mubr.f32.mxu0 0.0
      %579 = vmatmul.mubr.f32.gmra.mrb[0].mxu0 %v453
      %v580 = vpop.f32.mrb[0].mxu0
      %v581 = vadd.f32 0.0, %v580
      %v582 = vpop.f32.mrb[0].mxu0
      %583 = vmatprep.mubr.f32.mxu0 0.0
      %584 = vmatmul.mubr.f32.gmra.mrb[0].mxu0 %v456
      %v585 = vpop.f32.mrb[0].mxu0
      %v586 = vadd.f32 0.0, %v585
      %v587 = vpop.f32.mrb[0].mxu0
      %588 = vmatprep.mubr.f32.mxu0 0.0
      %589 = vmatmul.mubr.f32.gmra.mrb[0].mxu0 %v459
      %v590 = vpop.f32.mrb[0].mxu0
      %v591 = vadd.f32 0.0, %v590
      %v592 = vpop.f32.mrb[0].mxu0
      %593 = vmatprep.mubr.f32.mxu0 0.0
      %594 = vmatmul.mubr.f32.gmra.mrb[0].mxu0 %v462
      %v595 = vpop.f32.mrb[0].mxu0
      %v596 = vadd.f32 0.0, %v595
      %v597 = vpop.f32.mrb[0].mxu0
      %598 = vmatprep.mubr.f32.mxu0 0.0
      %599 = vmatmul.mubr.f32.gmra.mrb[0].mxu0 %v465
      %v600 = vpop.f32.mrb[0].mxu0
      %v601 = vadd.f32 0.0, %v600
      %v602 = vpop.f32.mrb[0].mxu0
      %603 = vmatprep.mubr.f32.mxu0 0.0
      %604 = vmatmul.mubr.f32.gmra.mrb[0].mxu0 %v468
      %v605 = vpop.f32.mrb[0].mxu0
      %v606 = vadd.f32 0.0, %v605
      %v607 = vpop.f32.mrb[0].mxu0
      %608 = vmatprep.mubr.f32.mxu0 0.0
      %609 = vmatmul.mubr.f32.gmra.mrb[0].mxu0 %v471
      %v610 = vpop.f32.mrb[0].mxu0
      %v611 = vadd.f32 0.0, %v610
      %v612 = vpop.f32.mrb[0].mxu0
      %613 = vmatprep.mubr.f32.mxu0 0.0
      %614 = vmatmul.mubr.f32.gmra.mrb[0].mxu0 %v474
      %v615 = vpop.f32.mrb[0].mxu0
      %v616 = vadd.f32 0.0, %v615
      %v617 = vpop.f32.mrb[0].mxu0
      %618 = vmatprep.mubr.f32.mxu0 0.0
      %619 = vmatmul.mubr.f32.gmra.mrb[0].mxu0 %v477
      %v620 = vpop.f32.mrb[0].mxu0
      %v621 = vadd.f32 0.0, %v620
      %v622 = vpop.f32.mrb[0].mxu0
      %623 = vdwg.mxu0
      %v624 = vld [vmem:[%s3] sm:$0xff]
      %v625 = vld [vmem:[%s3 + $0x8] sm:$0xff]
      %v626 = vld [vmem:[%s3 + $0x10] sm:$0xff]
      %v627 = vld [vmem:[%s3 + $0x18] sm:$0xff]
      %v628 = vld [vmem:[%s3 + $0x20] sm:$0xff]
      %v629 = vld [vmem:[%s3 + $0x28] sm:$0xff]
      %v630 = vld [vmem:[%s3 + $0x30] sm:$0xff]
      %v631 = vld [vmem:[%s3 + $0x38] sm:$0xff]
      %v632 = vld [vmem:[%s3 + $0x40] sm:$0xff]
      %v633 = vld [vmem:[%s3 + $0x48] sm:$0xff]
      %v634 = vld [vmem:[%s3 + $0x50] sm:$0xff]
      %v635 = vld [vmem:[%s3 + $0x58] sm:$0xff]
      %v636 = vld [vmem:[%s3 + $0x60] sm:$0xff]
      %v637 = vld [vmem:[%s3 + $0x68] sm:$0xff]
      %v638 = vld [vmem:[%s3 + $0x70] sm:$0xff]
      %v639 = vld [vmem:[%s3 + $0x78] sm:$0xff]
      %641 = vset.pattern.permute.xlu0 0
      %642 = vperm.xlu0 %641, %v624
      %v643 = vpop.permute.xlu0 %642
      %646 = vset.pattern.permute.xlu0 0
      %647 = vperm.xlu0 %646, %v625
      %v648 = vpop.permute.xlu0 %647
      %651 = vset.pattern.permute.xlu0 0
      %652 = vperm.xlu0 %651, %v626
      %v653 = vpop.permute.xlu0 %652
      %656 = vset.pattern.permute.xlu0 0
      %657 = vperm.xlu0 %656, %v627
      %v658 = vpop.permute.xlu0 %657
      %661 = vset.pattern.permute.xlu0 0
      %662 = vperm.xlu0 %661, %v628
      %v663 = vpop.permute.xlu0 %662
      %666 = vset.pattern.permute.xlu0 0
      %667 = vperm.xlu0 %666, %v629
      %v668 = vpop.permute.xlu0 %667
      %671 = vset.pattern.permute.xlu0 0
      %672 = vperm.xlu0 %671, %v630
      %v673 = vpop.permute.xlu0 %672
      %676 = vset.pattern.permute.xlu0 0
      %677 = vperm.xlu0 %676, %v631
      %v678 = vpop.permute.xlu0 %677
      %681 = vset.pattern.permute.xlu0 0
      %682 = vperm.xlu0 %681, %v632
      %v683 = vpop.permute.xlu0 %682
      %686 = vset.pattern.permute.xlu0 0
      %687 = vperm.xlu0 %686, %v633
      %v688 = vpop.permute.xlu0 %687
      %691 = vset.pattern.permute.xlu0 0
      %692 = vperm.xlu0 %691, %v634
      %v693 = vpop.permute.xlu0 %692
      %696 = vset.pattern.permute.xlu0 0
      %697 = vperm.xlu0 %696, %v635
      %v698 = vpop.permute.xlu0 %697
      %701 = vset.pattern.permute.xlu0 0
      %702 = vperm.xlu0 %701, %v636
      %v703 = vpop.permute.xlu0 %702
      %706 = vset.pattern.permute.xlu0 0
      %707 = vperm.xlu0 %706, %v637
      %v708 = vpop.permute.xlu0 %707
      %711 = vset.pattern.permute.xlu0 0
      %712 = vperm.xlu0 %711, %v638
      %v713 = vpop.permute.xlu0 %712
      %716 = vset.pattern.permute.xlu0 0
      %717 = vperm.xlu0 %716, %v639
      %v718 = vpop.permute.xlu0 %717
      %v720 = vmul.f32 %v546, %v643
      %v721 = vmul.f32 %v551, %v648
      %v722 = vmul.f32 %v556, %v653
      %v723 = vmul.f32 %v561, %v658
      %v724 = vmul.f32 %v566, %v663
      %v725 = vmul.f32 %v571, %v668
      %v726 = vmul.f32 %v576, %v673
      %v727 = vmul.f32 %v581, %v678
      %v728 = vmul.f32 %v586, %v683
      %v729 = vmul.f32 %v591, %v688
      %v730 = vmul.f32 %v596, %v693
      %v731 = vmul.f32 %v601, %v698
      %v732 = vmul.f32 %v606, %v703
      %v733 = vmul.f32 %v611, %v708
      %v734 = vmul.f32 %v616, %v713
      %v735 = vmul.f32 %v621, %v718
      %v736 = vld [vmem:[%s4] sm:$0xff]
      %v737 = vld [vmem:[%s4 + $0x8] sm:$0xff]
      %v738 = vld [vmem:[%s4 + $0x10] sm:$0xff]
      %v739 = vld [vmem:[%s4 + $0x18] sm:$0xff]
      %v740 = vld [vmem:[%s4 + $0x20] sm:$0xff]
      %v741 = vld [vmem:[%s4 + $0x28] sm:$0xff]
      %v742 = vld [vmem:[%s4 + $0x30] sm:$0xff]
      %v743 = vld [vmem:[%s4 + $0x38] sm:$0xff]
      %v744 = vld [vmem:[%s4 + $0x40] sm:$0xff]
      %v745 = vld [vmem:[%s4 + $0x48] sm:$0xff]
      %v746 = vld [vmem:[%s4 + $0x50] sm:$0xff]
      %v747 = vld [vmem:[%s4 + $0x58] sm:$0xff]
      %v748 = vld [vmem:[%s4 + $0x60] sm:$0xff]
      %v749 = vld [vmem:[%s4 + $0x68] sm:$0xff]
      %v750 = vld [vmem:[%s4 + $0x70] sm:$0xff]
      %v751 = vld [vmem:[%s4 + $0x78] sm:$0xff]
      %753 = vset.pattern.permute.xlu0 0
      %754 = vperm.xlu0 %753, %v736
      %v755 = vpop.permute.xlu0 %754
      %758 = vset.pattern.permute.xlu0 0
      %759 = vperm.xlu0 %758, %v737
      %v760 = vpop.permute.xlu0 %759
      %763 = vset.pattern.permute.xlu0 0
      %764 = vperm.xlu0 %763, %v738
      %v765 = vpop.permute.xlu0 %764
      %768 = vset.pattern.permute.xlu0 0
      %769 = vperm.xlu0 %768, %v739
      %v770 = vpop.permute.xlu0 %769
      %773 = vset.pattern.permute.xlu0 0
      %774 = vperm.xlu0 %773, %v740
      %v775 = vpop.permute.xlu0 %774
      %778 = vset.pattern.permute.xlu0 0
      %779 = vperm.xlu0 %778, %v741
      %v780 = vpop.permute.xlu0 %779
      %783 = vset.pattern.permute.xlu0 0
      %784 = vperm.xlu0 %783, %v742
      %v785 = vpop.permute.xlu0 %784
      %788 = vset.pattern.permute.xlu0 0
      %789 = vperm.xlu0 %788, %v743
      %v790 = vpop.permute.xlu0 %789
      %793 = vset.pattern.permute.xlu0 0
      %794 = vperm.xlu0 %793, %v744
      %v795 = vpop.permute.xlu0 %794
      %798 = vset.pattern.permute.xlu0 0
      %799 = vperm.xlu0 %798, %v745
      %v800 = vpop.permute.xlu0 %799
      %803 = vset.pattern.permute.xlu0 0
      %804 = vperm.xlu0 %803, %v746
      %v805 = vpop.permute.xlu0 %804
      %808 = vset.pattern.permute.xlu0 0
      %809 = vperm.xlu0 %808, %v747
      %v810 = vpop.permute.xlu0 %809
      %813 = vset.pattern.permute.xlu0 0
      %814 = vperm.xlu0 %813, %v748
      %v815 = vpop.permute.xlu0 %814
      %818 = vset.pattern.permute.xlu0 0
      %819 = vperm.xlu0 %818, %v749
      %v820 = vpop.permute.xlu0 %819
      %823 = vset.pattern.permute.xlu0 0
      %824 = vperm.xlu0 %823, %v750
      %v825 = vpop.permute.xlu0 %824
      %828 = vset.pattern.permute.xlu0 0
      %829 = vperm.xlu0 %828, %v751
      %v830 = vpop.permute.xlu0 %829
      %v832 = vadd.f32 %v720, %v755
      %v833 = vadd.f32 %v721, %v760
      %v834 = vadd.f32 %v722, %v765
      %v835 = vadd.f32 %v723, %v770
      %v836 = vadd.f32 %v724, %v775
      %v837 = vadd.f32 %v725, %v780
      %v838 = vadd.f32 %v726, %v785
      %v839 = vadd.f32 %v727, %v790
      %v840 = vadd.f32 %v728, %v795
      %v841 = vadd.f32 %v729, %v800
      %v842 = vadd.f32 %v730, %v805
      %v843 = vadd.f32 %v731, %v810
      %v844 = vadd.f32 %v732, %v815
      %v845 = vadd.f32 %v733, %v820
      %v846 = vadd.f32 %v734, %v825
      %v847 = vadd.f32 %v735, %v830
      %v848 = vmax.f32 %v832, 0.0
      %v849 = vmax.f32 %v833, 0.0
      %v850 = vmax.f32 %v834, 0.0
      %v851 = vmax.f32 %v835, 0.0
      %v852 = vmax.f32 %v836, 0.0
      %v853 = vmax.f32 %v837, 0.0
      %v854 = vmax.f32 %v838, 0.0
      %v855 = vmax.f32 %v839, 0.0
      %v856 = vmax.f32 %v840, 0.0
      %v857 = vmax.f32 %v841, 0.0
      %v858 = vmax.f32 %v842, 0.0
      %v859 = vmax.f32 %v843, 0.0
      %v860 = vmax.f32 %v844, 0.0
      %v861 = vmax.f32 %v845, 0.0
      %v862 = vmax.f32 %v846, 0.0
      %v863 = vmax.f32 %v847, 0.0
      %v864 = vld [vmem:[%s5] sm:$0xff]
      %v865 = vld [vmem:[%s5 + $0x8] sm:$0xff]
      %v866 = vld [vmem:[%s5 + $0x10] sm:$0xff]
      %v867 = vld [vmem:[%s5 + $0x18] sm:$0xff]
      %v868 = vld [vmem:[%s5 + $0x20] sm:$0xff]
      %v869 = vld [vmem:[%s5 + $0x28] sm:$0xff]
      %v870 = vld [vmem:[%s5 + $0x30] sm:$0xff]
      %v871 = vld [vmem:[%s5 + $0x38] sm:$0xff]
      %v872 = vld [vmem:[%s5 + $0x40] sm:$0xff]
      %v873 = vld [vmem:[%s5 + $0x48] sm:$0xff]
      %v874 = vld [vmem:[%s5 + $0x50] sm:$0xff]
      %v875 = vld [vmem:[%s5 + $0x58] sm:$0xff]
      %v876 = vld [vmem:[%s5 + $0x60] sm:$0xff]
      %v877 = vld [vmem:[%s5 + $0x68] sm:$0xff]
      %v878 = vld [vmem:[%s5 + $0x70] sm:$0xff]
      %v879 = vld [vmem:[%s5 + $0x78] sm:$0xff]
      %v881 = vsel %vm430, %v864, 0
      %v884 = vsel %vm430, %v865, 0
      %v887 = vsel %vm430, %v866, 0
      %v890 = vsel %vm430, %v867, 0
      %v893 = vsel %vm430, %v868, 0
      %v896 = vsel %vm430, %v869, 0
      %v899 = vsel %vm430, %v870, 0
      %v902 = vsel %vm430, %v871, 0
      %v905 = vsel %vm430, %v872, 0
      %v908 = vsel %vm430, %v873, 0
      %v911 = vsel %vm430, %v874, 0
      %v914 = vsel %vm430, %v875, 0
      %v917 = vsel %vm430, %v876, 0
      %v920 = vsel %vm430, %v877, 0
      %v923 = vsel %vm430, %v878, 0
      %v926 = vsel %vm430, %v879, 0
      %928 = vmatprep.subr.mxu0 0.0
      %929 = vmatpush1.msra.mxu0 %v408
      %930 = vmatprep.subr.mxu0 0.0
      %931 = vmatpush1.msra.mxu0 %v409
      %932 = vmatprep.subr.mxu0 0.0
      %933 = vmatpush1.msra.mxu0 %v410
      %934 = vmatprep.subr.mxu0 0.0
      %935 = vmatpush1.msra.mxu0 %v411
      %936 = vmatprep.subr.mxu0 0.0
      %937 = vmatpush1.msra.mxu0 0.0
      %938 = vmatprep.subr.mxu0 0.0
      %939 = vmatpush1.msra.mxu0 0.0
      %940 = vmatprep.subr.mxu0 0.0
      %941 = vmatpush1.msra.mxu0 0.0
      %942 = vmatprep.subr.mxu0 0.0
      %943 = vmatpush1.msra.mxu0 0.0
      %944 = vmatprep.subr.mxu0 0.0
      %945 = vmatpush1.msra.mxu0 0.0
      %946 = vmatprep.subr.mxu0 0.0
      %947 = vmatpush1.msra.mxu0 0.0
      %948 = vmatprep.subr.mxu0 0.0
      %949 = vmatpush1.msra.mxu0 0.0
      %950 = vmatprep.subr.mxu0 0.0
      %951 = vmatpush1.msra.mxu0 0.0
      %952 = vmatprep.subr.mxu0 0.0
      %953 = vmatpush1.msra.mxu0 0.0
      %954 = vmatprep.subr.mxu0 0.0
      %955 = vmatpush1.msra.mxu0 0.0
      %956 = vmatprep.subr.mxu0 0.0
      %957 = vmatpush1.msra.mxu0 0.0
      %958 = vmatprep.subr.mxu0 0.0
      %959 = vmatpush1.msra.mxu0 0.0
      %960 = vmatprep.subr.mxu0 0.0
      %961 = vmatpush1.msra.mxu0 0.0
      %962 = vmatprep.subr.mxu0 0.0
      %963 = vmatpush1.msra.mxu0 0.0
      %964 = vmatprep.subr.mxu0 0.0
      %965 = vmatpush1.msra.mxu0 0.0
      %966 = vmatprep.subr.mxu0 0.0
      %967 = vmatpush1.msra.mxu0 0.0
      %968 = vmatprep.subr.mxu0 0.0
      %969 = vmatpush1.msra.mxu0 0.0
      %970 = vmatprep.subr.mxu0 0.0
      %971 = vmatpush1.msra.mxu0 0.0
      %972 = vmatprep.subr.mxu0 0.0
      %973 = vmatpush1.msra.mxu0 0.0
      %974 = vmatprep.subr.mxu0 0.0
      %975 = vmatpush1.msra.mxu0 0.0
      %976 = vmatprep.subr.mxu0 0.0
      %977 = vmatpush1.msra.mxu0 0.0
      %978 = vmatprep.subr.mxu0 0.0
      %979 = vmatpush1.msra.mxu0 0.0
      %980 = vmatprep.subr.mxu0 0.0
      %981 = vmatpush1.msra.mxu0 0.0
      %982 = vmatprep.subr.mxu0 0.0
      %983 = vmatpush1.msra.mxu0 0.0
      %984 = vmatprep.subr.mxu0 0.0
      %985 = vmatpush1.msra.mxu0 0.0
      %986 = vmatprep.subr.mxu0 0.0
      %987 = vmatpush1.msra.mxu0 0.0
      %988 = vmatprep.subr.mxu0 0.0
      %989 = vmatpush1.msra.mxu0 0.0
      %990 = vmatprep.subr.mxu0 0.0
      %991 = vmatpush1.msra.mxu0 0.0
      %992 = vmatprep.mubr.f32.mxu0 0.0
      %993 = vmatmul.mubr.f32.gmra.mrb[0].mxu0 %v881
      %v994 = vpop.f32.mrb[0].mxu0
      %v995 = vadd.f32 0.0, %v994
      %v996 = vpop.f32.mrb[0].mxu0
      %997 = vmatprep.mubr.f32.mxu0 0.0
      %998 = vmatmul.mubr.f32.gmra.mrb[0].mxu0 %v884
      %v999 = vpop.f32.mrb[0].mxu0
      %v1000 = vadd.f32 0.0, %v999
      %v1001 = vpop.f32.mrb[0].mxu0
      %1002 = vmatprep.mubr.f32.mxu0 0.0
      %1003 = vmatmul.mubr.f32.gmra.mrb[0].mxu0 %v887
      %v1004 = vpop.f32.mrb[0].mxu0
      %v1005 = vadd.f32 0.0, %v1004
      %v1006 = vpop.f32.mrb[0].mxu0
      %1007 = vmatprep.mubr.f32.mxu0 0.0
      %1008 = vmatmul.mubr.f32.gmra.mrb[0].mxu0 %v890
      %v1009 = vpop.f32.mrb[0].mxu0
      %v1010 = vadd.f32 0.0, %v1009
      %v1011 = vpop.f32.mrb[0].mxu0
      %1012 = vmatprep.mubr.f32.mxu0 0.0
      %1013 = vmatmul.mubr.f32.gmra.mrb[0].mxu0 %v893
      %v1014 = vpop.f32.mrb[0].mxu0
      %v1015 = vadd.f32 0.0, %v1014
      %v1016 = vpop.f32.mrb[0].mxu0
      %1017 = vmatprep.mubr.f32.mxu0 0.0
      %1018 = vmatmul.mubr.f32.gmra.mrb[0].mxu0 %v896
      %v1019 = vpop.f32.mrb[0].mxu0
      %v1020 = vadd.f32 0.0, %v1019
      %v1021 = vpop.f32.mrb[0].mxu0
      %1022 = vmatprep.mubr.f32.mxu0 0.0
      %1023 = vmatmul.mubr.f32.gmra.mrb[0].mxu0 %v899
      %v1024 = vpop.f32.mrb[0].mxu0
      %v1025 = vadd.f32 0.0, %v1024
      %v1026 = vpop.f32.mrb[0].mxu0
      %1027 = vmatprep.mubr.f32.mxu0 0.0
      %1028 = vmatmul.mubr.f32.gmra.mrb[0].mxu0 %v902
      %v1029 = vpop.f32.mrb[0].mxu0
      %v1030 = vadd.f32 0.0, %v1029
      %v1031 = vpop.f32.mrb[0].mxu0
      %1032 = vmatprep.mubr.f32.mxu0 0.0
      %1033 = vmatmul.mubr.f32.gmra.mrb[0].mxu0 %v905
      %v1034 = vpop.f32.mrb[0].mxu0
      %v1035 = vadd.f32 0.0, %v1034
      %v1036 = vpop.f32.mrb[0].mxu0
      %1037 = vmatprep.mubr.f32.mxu0 0.0
      %1038 = vmatmul.mubr.f32.gmra.mrb[0].mxu0 %v908
      %v1039 = vpop.f32.mrb[0].mxu0
      %v1040 = vadd.f32 0.0, %v1039
      %v1041 = vpop.f32.mrb[0].mxu0
      %1042 = vmatprep.mubr.f32.mxu0 0.0
      %1043 = vmatmul.mubr.f32.gmra.mrb[0].mxu0 %v911
      %v1044 = vpop.f32.mrb[0].mxu0
      %v1045 = vadd.f32 0.0, %v1044
      %v1046 = vpop.f32.mrb[0].mxu0
      %1047 = vmatprep.mubr.f32.mxu0 0.0
      %1048 = vmatmul.mubr.f32.gmra.mrb[0].mxu0 %v914
      %v1049 = vpop.f32.mrb[0].mxu0
      %v1050 = vadd.f32 0.0, %v1049
      %v1051 = vpop.f32.mrb[0].mxu0
      %1052 = vmatprep.mubr.f32.mxu0 0.0
      %1053 = vmatmul.mubr.f32.gmra.mrb[0].mxu0 %v917
      %v1054 = vpop.f32.mrb[0].mxu0
      %v1055 = vadd.f32 0.0, %v1054
      %v1056 = vpop.f32.mrb[0].mxu0
      %1057 = vmatprep.mubr.f32.mxu0 0.0
      %1058 = vmatmul.mubr.f32.gmra.mrb[0].mxu0 %v920
      %v1059 = vpop.f32.mrb[0].mxu0
      %v1060 = vadd.f32 0.0, %v1059
      %v1061 = vpop.f32.mrb[0].mxu0
      %1062 = vmatprep.mubr.f32.mxu0 0.0
      %1063 = vmatmul.mubr.f32.gmra.mrb[0].mxu0 %v923
      %v1064 = vpop.f32.mrb[0].mxu0
      %v1065 = vadd.f32 0.0, %v1064
      %v1066 = vpop.f32.mrb[0].mxu0
      %1067 = vmatprep.mubr.f32.mxu0 0.0
      %1068 = vmatmul.mubr.f32.gmra.mrb[0].mxu0 %v926
      %v1069 = vpop.f32.mrb[0].mxu0
      %v1070 = vadd.f32 0.0, %v1069
      %v1071 = vpop.f32.mrb[0].mxu0
      %1072 = vdwg.mxu0
      %vm1073 = vcmask 523264
      %v1074 = vsel %vm1073, %v995, 0.0
      %1075 = vadd.xlane.f32.xlu0 %v1074
      %v1076 = vpop.xlane.xlu0 %1075
      %v1077 = vsel %vm1073, %v1000, 0.0
      %1078 = vadd.xlane.f32.xlu0 %v1077
      %v1079 = vpop.xlane.xlu0 %1078
      %v1080 = vsel %vm1073, %v1005, 0.0
      %1081 = vadd.xlane.f32.xlu0 %v1080
      %v1082 = vpop.xlane.xlu0 %1081
      %v1083 = vsel %vm1073, %v1010, 0.0
      %1084 = vadd.xlane.f32.xlu0 %v1083
      %v1085 = vpop.xlane.xlu0 %1084
      %v1086 = vsel %vm1073, %v1015, 0.0
      %1087 = vadd.xlane.f32.xlu0 %v1086
      %v1088 = vpop.xlane.xlu0 %1087
      %v1089 = vsel %vm1073, %v1020, 0.0
      %1090 = vadd.xlane.f32.xlu0 %v1089
      %v1091 = vpop.xlane.xlu0 %1090
      %v1092 = vsel %vm1073, %v1025, 0.0
      %1093 = vadd.xlane.f32.xlu0 %v1092
      %v1094 = vpop.xlane.xlu0 %1093
      %v1095 = vsel %vm1073, %v1030, 0.0
      %1096 = vadd.xlane.f32.xlu0 %v1095
      %v1097 = vpop.xlane.xlu0 %1096
      %v1098 = vsel %vm1073, %v1035, 0.0
      %1099 = vadd.xlane.f32.xlu0 %v1098
      %v1100 = vpop.xlane.xlu0 %1099
      %v1101 = vsel %vm1073, %v1040, 0.0
      %1102 = vadd.xlane.f32.xlu0 %v1101
      %v1103 = vpop.xlane.xlu0 %1102
      %v1104 = vsel %vm1073, %v1045, 0.0
      %1105 = vadd.xlane.f32.xlu0 %v1104
      %v1106 = vpop.xlane.xlu0 %1105
      %v1107 = vsel %vm1073, %v1050, 0.0
      %1108 = vadd.xlane.f32.xlu0 %v1107
      %v1109 = vpop.xlane.xlu0 %1108
      %v1110 = vsel %vm1073, %v1055, 0.0
      %1111 = vadd.xlane.f32.xlu0 %v1110
      %v1112 = vpop.xlane.xlu0 %1111
      %v1113 = vsel %vm1073, %v1060, 0.0
      %1114 = vadd.xlane.f32.xlu0 %v1113
      %v1115 = vpop.xlane.xlu0 %1114
      %v1116 = vsel %vm1073, %v1065, 0.0
      %1117 = vadd.xlane.f32.xlu0 %v1116
      %v1118 = vpop.xlane.xlu0 %1117
      %v1119 = vsel %vm1073, %v1070, 0.0
      %1120 = vadd.xlane.f32.xlu0 %v1119
      %v1121 = vpop.xlane.xlu0 %1120
      %v1122 = vrcp.pop 64.0
      %v1123 = vmul.f32 %v1076, %v1122
      %v1124 = vmul.f32 %v1079, %v1122
      %v1125 = vmul.f32 %v1082, %v1122
      %v1126 = vmul.f32 %v1085, %v1122
      %v1127 = vmul.f32 %v1088, %v1122
      %v1128 = vmul.f32 %v1091, %v1122
      %v1129 = vmul.f32 %v1094, %v1122
      %v1130 = vmul.f32 %v1097, %v1122
      %v1131 = vmul.f32 %v1100, %v1122
      %v1132 = vmul.f32 %v1103, %v1122
      %v1133 = vmul.f32 %v1106, %v1122
      %v1134 = vmul.f32 %v1109, %v1122
      %v1135 = vmul.f32 %v1112, %v1122
      %v1136 = vmul.f32 %v1115, %v1122
      %v1137 = vmul.f32 %v1118, %v1122
      %v1138 = vmul.f32 %v1121, %v1122
      %v1139 = vxor.u32 %v1123, 2147483648
      %v1140 = vxor.u32 %v1124, 2147483648
      %v1141 = vxor.u32 %v1125, 2147483648
      %v1142 = vxor.u32 %v1126, 2147483648
      %v1143 = vxor.u32 %v1127, 2147483648
      %v1144 = vxor.u32 %v1128, 2147483648
      %v1145 = vxor.u32 %v1129, 2147483648
      %v1146 = vxor.u32 %v1130, 2147483648
      %v1147 = vxor.u32 %v1131, 2147483648
      %v1148 = vxor.u32 %v1132, 2147483648
      %v1149 = vxor.u32 %v1133, 2147483648
      %v1150 = vxor.u32 %v1134, 2147483648
      %v1151 = vxor.u32 %v1135, 2147483648
      %v1152 = vxor.u32 %v1136, 2147483648
      %v1153 = vxor.u32 %v1137, 2147483648
      %v1154 = vxor.u32 %v1138, 2147483648
      %v1155 = vmul.f32 %v1139, 1.442695
      %v1156 = vpow.pop %v1155
      %v1157 = vmul.f32 %v1140, 1.442695
      %v1158 = vpow.pop %v1157
      %v1159 = vmul.f32 %v1141, 1.442695
      %v1160 = vpow.pop %v1159
      %v1161 = vmul.f32 %v1142, 1.442695
      %v1162 = vpow.pop %v1161
      %v1163 = vmul.f32 %v1143, 1.442695
      %v1164 = vpow.pop %v1163
      %v1165 = vmul.f32 %v1144, 1.442695
      %v1166 = vpow.pop %v1165
      %v1167 = vmul.f32 %v1145, 1.442695
      %v1168 = vpow.pop %v1167
      %v1169 = vmul.f32 %v1146, 1.442695
      %v1170 = vpow.pop %v1169
      %v1171 = vmul.f32 %v1147, 1.442695
      %v1172 = vpow.pop %v1171
      %v1173 = vmul.f32 %v1148, 1.442695
      %v1174 = vpow.pop %v1173
      %v1175 = vmul.f32 %v1149, 1.442695
      %v1176 = vpow.pop %v1175
      %v1177 = vmul.f32 %v1150, 1.442695
      %v1178 = vpow.pop %v1177
      %v1179 = vmul.f32 %v1151, 1.442695
      %v1180 = vpow.pop %v1179
      %v1181 = vmul.f32 %v1152, 1.442695
      %v1182 = vpow.pop %v1181
      %v1183 = vmul.f32 %v1153, 1.442695
      %v1184 = vpow.pop %v1183
      %v1185 = vmul.f32 %v1154, 1.442695
      %v1186 = vpow.pop %v1185
      %v1187 = vadd.f32 %v1156, 1.0
      %v1188 = vadd.f32 %v1158, 1.0
      %v1189 = vadd.f32 %v1160, 1.0
      %v1190 = vadd.f32 %v1162, 1.0
      %v1191 = vadd.f32 %v1164, 1.0
      %v1192 = vadd.f32 %v1166, 1.0
      %v1193 = vadd.f32 %v1168, 1.0
      %v1194 = vadd.f32 %v1170, 1.0
      %v1195 = vadd.f32 %v1172, 1.0
      %v1196 = vadd.f32 %v1174, 1.0
      %v1197 = vadd.f32 %v1176, 1.0
      %v1198 = vadd.f32 %v1178, 1.0
      %v1199 = vadd.f32 %v1180, 1.0
      %v1200 = vadd.f32 %v1182, 1.0
      %v1201 = vadd.f32 %v1184, 1.0
      %v1202 = vadd.f32 %v1186, 1.0
      %v1203 = vrcp.pop %v1187
      %v1204 = vmul.f32 1.0, %v1203
      %v1205 = vrcp.pop %v1188
      %v1206 = vmul.f32 1.0, %v1205
      %v1207 = vrcp.pop %v1189
      %v1208 = vmul.f32 1.0, %v1207
      %v1209 = vrcp.pop %v1190
      %v1210 = vmul.f32 1.0, %v1209
      %v1211 = vrcp.pop %v1191
      %v1212 = vmul.f32 1.0, %v1211
      %v1213 = vrcp.pop %v1192
      %v1214 = vmul.f32 1.0, %v1213
      %v1215 = vrcp.pop %v1193
      %v1216 = vmul.f32 1.0, %v1215
      %v1217 = vrcp.pop %v1194
      %v1218 = vmul.f32 1.0, %v1217
      %v1219 = vrcp.pop %v1195
      %v1220 = vmul.f32 1.0, %v1219
      %v1221 = vrcp.pop %v1196
      %v1222 = vmul.f32 1.0, %v1221
      %v1223 = vrcp.pop %v1197
      %v1224 = vmul.f32 1.0, %v1223
      %v1225 = vrcp.pop %v1198
      %v1226 = vmul.f32 1.0, %v1225
      %v1227 = vrcp.pop %v1199
      %v1228 = vmul.f32 1.0, %v1227
      %v1229 = vrcp.pop %v1200
      %v1230 = vmul.f32 1.0, %v1229
      %v1231 = vrcp.pop %v1201
      %v1232 = vmul.f32 1.0, %v1231
      %v1233 = vrcp.pop %v1202
      %v1234 = vmul.f32 1.0, %v1233
      %v1235 = vmul.f32 %v848, %v1204
      %v1236 = vmul.f32 %v849, %v1206
      %v1237 = vmul.f32 %v850, %v1208
      %v1238 = vmul.f32 %v851, %v1210
      %v1239 = vmul.f32 %v852, %v1212
      %v1240 = vmul.f32 %v853, %v1214
      %v1241 = vmul.f32 %v854, %v1216
      %v1242 = vmul.f32 %v855, %v1218
      %v1243 = vmul.f32 %v856, %v1220
      %v1244 = vmul.f32 %v857, %v1222
      %v1245 = vmul.f32 %v858, %v1224
      %v1246 = vmul.f32 %v859, %v1226
      %v1247 = vmul.f32 %v860, %v1228
      %v1248 = vmul.f32 %v861, %v1230
      %v1249 = vmul.f32 %v862, %v1232
      %v1250 = vmul.f32 %v863, %v1234
      %v1251 = vld [vmem:[%s6] sm:$0x7]
      %1252 = vmatprep.subr.mxu0 0.0
      %1253 = vmatpush1.msra.mxu0 %v1235
      %1254 = vmatprep.subr.mxu0 0.0
      %1255 = vmatpush1.msra.mxu0 %v1236
      %1256 = vmatprep.subr.mxu0 0.0
      %1257 = vmatpush1.msra.mxu0 %v1237
      %1258 = vmatprep.subr.mxu0 0.0
      %1259 = vmatpush1.msra.mxu0 %v1238
      %1260 = vmatprep.subr.mxu0 0.0
      %1261 = vmatpush1.msra.mxu0 %v1239
      %1262 = vmatprep.subr.mxu0 0.0
      %1263 = vmatpush1.msra.mxu0 %v1240
      %1264 = vmatprep.subr.mxu0 0.0
      %1265 = vmatpush1.msra.mxu0 %v1241
      %1266 = vmatprep.subr.mxu0 0.0
      %1267 = vmatpush1.msra.mxu0 %v1242
      %1268 = vmatprep.subr.mxu0 0.0
      %1269 = vmatpush1.msra.mxu0 %v1243
      %1270 = vmatprep.subr.mxu0 0.0
      %1271 = vmatpush1.msra.mxu0 %v1244
      %1272 = vmatprep.subr.mxu0 0.0
      %1273 = vmatpush1.msra.mxu0 %v1245
      %1274 = vmatprep.subr.mxu0 0.0
      %1275 = vmatpush1.msra.mxu0 %v1246
      %1276 = vmatprep.subr.mxu0 0.0
      %1277 = vmatpush1.msra.mxu0 %v1247
      %1278 = vmatprep.subr.mxu0 0.0
      %1279 = vmatpush1.msra.mxu0 %v1248
      %1280 = vmatprep.subr.mxu0 0.0
      %1281 = vmatpush1.msra.mxu0 %v1249
      %1282 = vmatprep.subr.mxu0 0.0
      %1283 = vmatpush1.msra.mxu0 %v1250
      %1284 = vmatprep.subr.mxu0 0.0
      %1285 = vmatpush1.msra.mxu0 0.0
      %1286 = vmatprep.subr.mxu0 0.0
      %1287 = vmatpush1.msra.mxu0 0.0
      %1288 = vmatprep.subr.mxu0 0.0
      %1289 = vmatpush1.msra.mxu0 0.0
      %1290 = vmatprep.subr.mxu0 0.0
      %1291 = vmatpush1.msra.mxu0 0.0
      %1292 = vmatprep.subr.mxu0 0.0
      %1293 = vmatpush1.msra.mxu0 0.0
      %1294 = vmatprep.subr.mxu0 0.0
      %1295 = vmatpush1.msra.mxu0 0.0
      %1296 = vmatprep.subr.mxu0 0.0
      %1297 = vmatpush1.msra.mxu0 0.0
      %1298 = vmatprep.subr.mxu0 0.0
      %1299 = vmatpush1.msra.mxu0 0.0
      %1300 = vmatprep.subr.mxu0 0.0
      %1301 = vmatpush1.msra.mxu0 0.0
      %1302 = vmatprep.subr.mxu0 0.0
      %1303 = vmatpush1.msra.mxu0 0.0
      %1304 = vmatprep.subr.mxu0 0.0
      %1305 = vmatpush1.msra.mxu0 0.0
      %1306 = vmatprep.subr.mxu0 0.0
      %1307 = vmatpush1.msra.mxu0 0.0
      %1308 = vmatprep.subr.mxu0 0.0
      %1309 = vmatpush1.msra.mxu0 0.0
      %1310 = vmatprep.subr.mxu0 0.0
      %1311 = vmatpush1.msra.mxu0 0.0
      %1312 = vmatprep.subr.mxu0 0.0
      %1313 = vmatpush1.msra.mxu0 0.0
      %1314 = vmatprep.subr.mxu0 0.0
      %1315 = vmatpush1.msra.mxu0 0.0
      %1316 = vmatprep.mubr.f32.mxu0 0.0
      %1317 = vmatmul.mubr.f32.gmra.mrb[0].mxu0 %v1251
      %v1318 = vpop.f32.mrb[0].mxu0
      %v1319 = vadd.f32 0.0, %v1318
      %v1320 = vpop.f32.mrb[0].mxu0
      %1321 = vdwg.mxu0
      %v1322 = vld [vmem:[%s7] sm:$0x7]
      %v1323 = vpack.c.bf16 %v1319, %v1319
      %v1324 = vld [vmem:[%s9] sm:$0xff]
      %v1325 = vld [vmem:[%s9 + $0x8] sm:$0xff]
      %v1326 = vld [vmem:[%s9 + $0x10] sm:$0xff]
      %v1327 = vld [vmem:[%s9 + $0x18] sm:$0xff]
      %v1328 = vld [vmem:[%s9 + $0x20] sm:$0xff]
      %v1329 = vld [vmem:[%s9 + $0x28] sm:$0xff]
      %v1330 = vld [vmem:[%s9 + $0x30] sm:$0xff]
      %v1331 = vld [vmem:[%s9 + $0x38] sm:$0xff]
      %v1340 = vunpack.c.l.b16 %v1324
      %v1341 = vunpack.c.h.b16 %v1324
      %v1342 = vunpack.c.l.b16 %v1325
      %v1343 = vunpack.c.h.b16 %v1325
      %v1344 = vunpack.c.l.b16 %v1326
      %v1345 = vunpack.c.h.b16 %v1326
      %v1346 = vunpack.c.l.b16 %v1327
      %v1347 = vunpack.c.h.b16 %v1327
      %v1348 = vunpack.c.l.b16 %v1328
      %v1349 = vunpack.c.h.b16 %v1328
      %v1350 = vunpack.c.l.b16 %v1329
      %v1351 = vunpack.c.h.b16 %v1329
      %v1352 = vunpack.c.l.b16 %v1330
      %v1353 = vunpack.c.h.b16 %v1330
      %v1354 = vunpack.c.l.b16 %v1331
      %v1355 = vunpack.c.h.b16 %v1331
      %v1356 = vpack.c.b16 %v1342, %v1340
      %v1357 = vpack.c.b16 %v1343, %v1341
      %v1358 = vpack.c.b16 %v1346, %v1344
      %v1359 = vpack.c.b16 %v1347, %v1345
      %v1360 = vpack.c.b16 %v1350, %v1348
      %v1361 = vpack.c.b16 %v1351, %v1349
      %v1362 = vpack.c.b16 %v1354, %v1352
      %v1363 = vpack.c.b16 %v1355, %v1353
      %v1373 = vsel %vm1073, %v1323, 0
      %1375 = vmatprep.subr.bf16.mxu0 %v1357
      %1376 = vmatpush1.bf16.msra.mxu0 %v1356
      %1377 = vmatprep.subr.bf16.mxu0 %v1359
      %1378 = vmatpush1.bf16.msra.mxu0 %v1358
      %1379 = vmatprep.subr.bf16.mxu0 %v1361
      %1380 = vmatpush1.bf16.msra.mxu0 %v1360
      %1381 = vmatprep.subr.bf16.mxu0 %v1363
      %1382 = vmatpush1.bf16.msra.mxu0 %v1362
      %1383 = vmatprep.subr.bf16.mxu0 0
      %1384 = vmatpush1.bf16.msra.mxu0 0
      %1385 = vmatprep.subr.bf16.mxu0 0
      %1386 = vmatpush1.bf16.msra.mxu0 0
      %1387 = vmatprep.subr.bf16.mxu0 0
      %1388 = vmatpush1.bf16.msra.mxu0 0
      %1389 = vmatprep.subr.bf16.mxu0 0
      %1390 = vmatpush1.bf16.msra.mxu0 0
      %1391 = vmatprep.subr.bf16.mxu0 0
      %1392 = vmatpush1.bf16.msra.mxu0 0
      %1393 = vmatprep.subr.bf16.mxu0 0
      %1394 = vmatpush1.bf16.msra.mxu0 0
      %1395 = vmatprep.subr.bf16.mxu0 0
      %1396 = vmatpush1.bf16.msra.mxu0 0
      %1397 = vmatprep.subr.bf16.mxu0 0
      %1398 = vmatpush1.bf16.msra.mxu0 0
      %1399 = vmatprep.subr.bf16.mxu0 0
      %1400 = vmatpush1.bf16.msra.mxu0 0
      %1401 = vmatprep.subr.bf16.mxu0 0
      %1402 = vmatpush1.bf16.msra.mxu0 0
      %1403 = vmatprep.subr.bf16.mxu0 0
      %1404 = vmatpush1.bf16.msra.mxu0 0
      %1405 = vmatprep.subr.bf16.mxu0 0
      %1406 = vmatpush1.bf16.msra.mxu0 0
      %1407 = vmatprep.mubr.bf16.mxu0 0
      %1408 = vmatmul.mubr.bf16.gmra.mrb[0].mxu0 %v1373
      %v1409 = vpop.f32.mrb[0].mxu0
      %v1410 = vadd.f32 0.0, %v1409
      %v1411 = vpop.f32.mrb[0].mxu0
      %v1412 = vadd.f32 0.0, %v1411
      %v1413 = vpop.f32.mrb[0].mxu0
      %v1414 = vpop.f32.mrb[0].mxu0
      %1415 = vdwg.mxu0
      %vm1416 = vcmask 64512
      %v1418 = vsel %vm1416, %v1322, 0
      %1420 = vmatprep.subr.mxu0 %v413
      %1421 = vmatpush1.msra.mxu0 %v412
      %1422 = vmatprep.subr.mxu0 0.0
      %1423 = vmatpush1.msra.mxu0 0.0
      %1424 = vmatprep.subr.mxu0 0.0
      %1425 = vmatpush1.msra.mxu0 0.0
      %1426 = vmatprep.subr.mxu0 0.0
      %1427 = vmatpush1.msra.mxu0 0.0
      %1428 = vmatprep.subr.mxu0 0.0
      %1429 = vmatpush1.msra.mxu0 0.0
      %1430 = vmatprep.subr.mxu0 0.0
      %1431 = vmatpush1.msra.mxu0 0.0
      %1432 = vmatprep.subr.mxu0 0.0
      %1433 = vmatpush1.msra.mxu0 0.0
      %1434 = vmatprep.subr.mxu0 0.0
      %1435 = vmatpush1.msra.mxu0 0.0
      %1436 = vmatprep.subr.mxu0 0.0
      %1437 = vmatpush1.msra.mxu0 0.0
      %1438 = vmatprep.subr.mxu0 0.0
      %1439 = vmatpush1.msra.mxu0 0.0
      %1440 = vmatprep.subr.mxu0 0.0
      %1441 = vmatpush1.msra.mxu0 0.0
      %1442 = vmatprep.subr.mxu0 0.0
      %1443 = vmatpush1.msra.mxu0 0.0
      %1444 = vmatprep.subr.mxu0 0.0
      %1445 = vmatpush1.msra.mxu0 0.0
      %1446 = vmatprep.subr.mxu0 0.0
      %1447 = vmatpush1.msra.mxu0 0.0
      %1448 = vmatprep.subr.mxu0 0.0
      %1449 = vmatpush1.msra.mxu0 0.0
      %1450 = vmatprep.subr.mxu0 0.0
      %1451 = vmatpush1.msra.mxu0 0.0
      %1452 = vmatprep.subr.mxu0 0.0
      %1453 = vmatpush1.msra.mxu0 0.0
      %1454 = vmatprep.subr.mxu0 0.0
      %1455 = vmatpush1.msra.mxu0 0.0
      %1456 = vmatprep.subr.mxu0 0.0
      %1457 = vmatpush1.msra.mxu0 0.0
      %1458 = vmatprep.subr.mxu0 0.0
      %1459 = vmatpush1.msra.mxu0 0.0
      %1460 = vmatprep.subr.mxu0 0.0
      %1461 = vmatpush1.msra.mxu0 0.0
      %1462 = vmatprep.subr.mxu0 0.0
      %1463 = vmatpush1.msra.mxu0 0.0
      %1464 = vmatprep.subr.mxu0 0.0
      %1465 = vmatpush1.msra.mxu0 0.0
      %1466 = vmatprep.subr.mxu0 0.0
      %1467 = vmatpush1.msra.mxu0 0.0
      %1468 = vmatprep.subr.mxu0 0.0
      %1469 = vmatpush1.msra.mxu0 0.0
      %1470 = vmatprep.subr.mxu0 0.0
      %1471 = vmatpush1.msra.mxu0 0.0
      %1472 = vmatprep.subr.mxu0 0.0
      %1473 = vmatpush1.msra.mxu0 0.0
      %1474 = vmatprep.subr.mxu0 0.0
      %1475 = vmatpush1.msra.mxu0 0.0
      %1476 = vmatprep.subr.mxu0 0.0
      %1477 = vmatpush1.msra.mxu0 0.0
      %1478 = vmatprep.subr.mxu0 0.0
      %1479 = vmatpush1.msra.mxu0 0.0
      %1480 = vmatprep.subr.mxu0 0.0
      %1481 = vmatpush1.msra.mxu0 0.0
      %1482 = vmatprep.subr.mxu0 0.0
      %1483 = vmatpush1.msra.mxu0 0.0
      %1484 = vmatprep.mubr.f32.mxu0 0.0
      %1485 = vmatmul.mubr.f32.gmra.mrb[0].mxu0 %v1418
      %v1486 = vpop.f32.mrb[0].mxu0
      %v1487 = vadd.f32 %v1410, %v1486
      %v1488 = vpop.f32.mrb[0].mxu0
      %v1489 = vadd.f32 %v1412, %v1488
      %1490 = vdwg.mxu0
      %v1491 = vld [vmem:[%s8] sm:$0x7]
      %1493 = vset.pattern.permute.xlu0 0
      %1494 = vperm.xlu0 %1493, %v1491
      %v1495 = vpop.permute.xlu0 %1494
      %v1497 = vadd.f32 %v1487, %v1495
      %v1498 = vadd.f32 %v1489, %v1495
      %v1499 = vpack.c.bf16 %v1497, %v1497
      %v1500 = vpack.c.bf16 %v1498, %v1498
      %v1501 = vld [vmem:[%s10] sm:$0xff]
      %v1502 = vld [vmem:[%s10 + $0x8] sm:$0xff]
      %v1503 = vld [vmem:[%s10 + $0x10] sm:$0xff]
      %v1504 = vld [vmem:[%s10 + $0x18] sm:$0xff]
      %v1505 = vld [vmem:[%s10 + $0x20] sm:$0xff]
      %v1506 = vld [vmem:[%s10 + $0x28] sm:$0xff]
      %v1507 = vld [vmem:[%s10 + $0x30] sm:$0xff]
      %v1508 = vld [vmem:[%s10 + $0x38] sm:$0xff]
      %v1509 = vld [vmem:[%s10 + $0x40] sm:$0xff]
      %v1510 = vld [vmem:[%s10 + $0x48] sm:$0xff]
      %v1511 = vld [vmem:[%s10 + $0x50] sm:$0xff]
      %v1512 = vld [vmem:[%s10 + $0x58] sm:$0xff]
      %v1513 = vld [vmem:[%s10 + $0x60] sm:$0xff]
      %v1514 = vld [vmem:[%s10 + $0x68] sm:$0xff]
      %v1515 = vld [vmem:[%s10 + $0x70] sm:$0xff]
      %v1516 = vld [vmem:[%s10 + $0x78] sm:$0xff]
      %v1517 = vld [vmem:[%s10 + $0x80] sm:$0xff]
      %v1518 = vld [vmem:[%s10 + $0x88] sm:$0xff]
      %v1519 = vld [vmem:[%s10 + $0x90] sm:$0xff]
      %v1520 = vld [vmem:[%s10 + $0x98] sm:$0xff]
      %v1521 = vld [vmem:[%s10 + $0xa0] sm:$0xff]
      %v1522 = vld [vmem:[%s10 + $0xa8] sm:$0xff]
      %v1523 = vld [vmem:[%s10 + $0xb0] sm:$0xff]
      %v1524 = vld [vmem:[%s10 + $0xb8] sm:$0xff]
      %v1525 = vld [vmem:[%s10 + $0xc0] sm:$0xff]
      %v1526 = vld [vmem:[%s10 + $0xc8] sm:$0xff]
      %v1527 = vld [vmem:[%s10 + $0xd0] sm:$0xff]
      %v1528 = vld [vmem:[%s10 + $0xd8] sm:$0xff]
      %v1529 = vld [vmem:[%s10 + $0xe0] sm:$0xff]
      %v1530 = vld [vmem:[%s10 + $0xe8] sm:$0xff]
      %v1531 = vld [vmem:[%s10 + $0xf0] sm:$0xff]
      %v1532 = vld [vmem:[%s10 + $0xf8] sm:$0xff]
      %v1533 = vld [vmem:[%s10 + $0x100] sm:$0xff]
      %v1534 = vld [vmem:[%s10 + $0x108] sm:$0xff]
      %v1535 = vld [vmem:[%s10 + $0x110] sm:$0xff]
      %v1536 = vld [vmem:[%s10 + $0x118] sm:$0xff]
      %v1537 = vld [vmem:[%s10 + $0x120] sm:$0xff]
      %v1538 = vld [vmem:[%s10 + $0x128] sm:$0xff]
      %v1539 = vld [vmem:[%s10 + $0x130] sm:$0xff]
      %v1540 = vld [vmem:[%s10 + $0x138] sm:$0xff]
      %v1541 = vld [vmem:[%s10 + $0x140] sm:$0xff]
      %v1542 = vld [vmem:[%s10 + $0x148] sm:$0xff]
      %v1543 = vld [vmem:[%s10 + $0x150] sm:$0xff]
      %v1544 = vld [vmem:[%s10 + $0x158] sm:$0xff]
      %v1545 = vld [vmem:[%s10 + $0x160] sm:$0xff]
      %v1546 = vld [vmem:[%s10 + $0x168] sm:$0xff]
      %v1547 = vld [vmem:[%s10 + $0x170] sm:$0xff]
      %v1548 = vld [vmem:[%s10 + $0x178] sm:$0xff]
      %v1549 = vld [vmem:[%s10 + $0x180] sm:$0xff]
      %v1550 = vld [vmem:[%s10 + $0x188] sm:$0xff]
      %v1551 = vld [vmem:[%s10 + $0x190] sm:$0xff]
      %v1552 = vld [vmem:[%s10 + $0x198] sm:$0xff]
      %v1553 = vld [vmem:[%s10 + $0x1a0] sm:$0xff]
      %v1554 = vld [vmem:[%s10 + $0x1a8] sm:$0xff]
      %v1555 = vld [vmem:[%s10 + $0x1b0] sm:$0xff]
      %v1556 = vld [vmem:[%s10 + $0x1b8] sm:$0xff]
      %v1557 = vld [vmem:[%s10 + $0x1c0] sm:$0xff]
      %v1558 = vld [vmem:[%s10 + $0x1c8] sm:$0xff]
      %v1559 = vld [vmem:[%s10 + $0x1d0] sm:$0xff]
      %v1560 = vld [vmem:[%s10 + $0x1d8] sm:$0xff]
      %v1561 = vld [vmem:[%s10 + $0x1e0] sm:$0xff]
      %v1562 = vld [vmem:[%s10 + $0x1e8] sm:$0xff]
      %v1563 = vld [vmem:[%s10 + $0x1f0] sm:$0xff]
      %v1564 = vld [vmem:[%s10 + $0x1f8] sm:$0xff]
      %v1565 = vld [vmem:[%s10 + $0x200] sm:$0xff]
      %v1566 = vld [vmem:[%s10 + $0x208] sm:$0xff]
      %v1567 = vld [vmem:[%s10 + $0x210] sm:$0xff]
      %v1568 = vld [vmem:[%s10 + $0x218] sm:$0xff]
      %v1569 = vld [vmem:[%s10 + $0x220] sm:$0xff]
      %v1570 = vld [vmem:[%s10 + $0x228] sm:$0xff]
      %v1571 = vld [vmem:[%s10 + $0x230] sm:$0xff]
      %v1572 = vld [vmem:[%s10 + $0x238] sm:$0xff]
      %v1573 = vld [vmem:[%s10 + $0x240] sm:$0xff]
      %v1574 = vld [vmem:[%s10 + $0x248] sm:$0xff]
      %v1575 = vld [vmem:[%s10 + $0x250] sm:$0xff]
      %v1576 = vld [vmem:[%s10 + $0x258] sm:$0xff]
      %v1577 = vld [vmem:[%s10 + $0x260] sm:$0xff]
      %v1578 = vld [vmem:[%s10 + $0x268] sm:$0xff]
      %v1579 = vld [vmem:[%s10 + $0x270] sm:$0xff]
      %v1580 = vld [vmem:[%s10 + $0x278] sm:$0xff]
      %v1581 = vld [vmem:[%s10 + $0x280] sm:$0xff]
      %v1582 = vld [vmem:[%s10 + $0x288] sm:$0xff]
      %v1583 = vld [vmem:[%s10 + $0x290] sm:$0xff]
      %v1584 = vld [vmem:[%s10 + $0x298] sm:$0xff]
      %v1585 = vld [vmem:[%s10 + $0x2a0] sm:$0xff]
      %v1586 = vld [vmem:[%s10 + $0x2a8] sm:$0xff]
      %v1587 = vld [vmem:[%s10 + $0x2b0] sm:$0xff]
      %v1588 = vld [vmem:[%s10 + $0x2b8] sm:$0xff]
      %v1589 = vld [vmem:[%s10 + $0x2c0] sm:$0xff]
      %v1590 = vld [vmem:[%s10 + $0x2c8] sm:$0xff]
      %v1591 = vld [vmem:[%s10 + $0x2d0] sm:$0xff]
      %v1592 = vld [vmem:[%s10 + $0x2d8] sm:$0xff]
      %v1593 = vld [vmem:[%s10 + $0x2e0] sm:$0xff]
      %v1594 = vld [vmem:[%s10 + $0x2e8] sm:$0xff]
      %v1595 = vld [vmem:[%s10 + $0x2f0] sm:$0xff]
      %v1596 = vld [vmem:[%s10 + $0x2f8] sm:$0xff]
      %v1597 = vld [vmem:[%s10 + $0x300] sm:$0xff]
      %v1598 = vld [vmem:[%s10 + $0x308] sm:$0xff]
      %v1599 = vld [vmem:[%s10 + $0x310] sm:$0xff]
      %v1600 = vld [vmem:[%s10 + $0x318] sm:$0xff]
      %v1601 = vld [vmem:[%s10 + $0x320] sm:$0xff]
      %v1602 = vld [vmem:[%s10 + $0x328] sm:$0xff]
      %v1603 = vld [vmem:[%s10 + $0x330] sm:$0xff]
      %v1604 = vld [vmem:[%s10 + $0x338] sm:$0xff]
      %v1605 = vld [vmem:[%s10 + $0x340] sm:$0xff]
      %v1606 = vld [vmem:[%s10 + $0x348] sm:$0xff]
      %v1607 = vld [vmem:[%s10 + $0x350] sm:$0xff]
      %v1608 = vld [vmem:[%s10 + $0x358] sm:$0xff]
      %v1609 = vld [vmem:[%s10 + $0x360] sm:$0xff]
      %v1610 = vld [vmem:[%s10 + $0x368] sm:$0xff]
      %v1611 = vld [vmem:[%s10 + $0x370] sm:$0xff]
      %v1612 = vld [vmem:[%s10 + $0x378] sm:$0xff]
      %v1613 = vld [vmem:[%s10 + $0x380] sm:$0xff]
      %v1614 = vld [vmem:[%s10 + $0x388] sm:$0xff]
      %v1615 = vld [vmem:[%s10 + $0x390] sm:$0xff]
      %v1616 = vld [vmem:[%s10 + $0x398] sm:$0xff]
      %v1617 = vld [vmem:[%s10 + $0x3a0] sm:$0xff]
      %v1618 = vld [vmem:[%s10 + $0x3a8] sm:$0xff]
      %v1619 = vld [vmem:[%s10 + $0x3b0] sm:$0xff]
      %v1620 = vld [vmem:[%s10 + $0x3b8] sm:$0xff]
      %v1621 = vld [vmem:[%s10 + $0x3c0] sm:$0xff]
      %v1622 = vld [vmem:[%s10 + $0x3c8] sm:$0xff]
      %v1623 = vld [vmem:[%s10 + $0x3d0] sm:$0xff]
      %v1624 = vld [vmem:[%s10 + $0x3d8] sm:$0xff]
      %v1625 = vld [vmem:[%s10 + $0x3e0] sm:$0xff]
      %v1626 = vld [vmem:[%s10 + $0x3e8] sm:$0xff]
      %v1627 = vld [vmem:[%s10 + $0x3f0] sm:$0xff]
      %v1628 = vld [vmem:[%s10 + $0x3f8] sm:$0xff]
      %v1757 = vunpack.c.l.b16 %v1501
      %v1758 = vunpack.c.h.b16 %v1501
      %v1759 = vunpack.c.l.b16 %v1502
      %v1760 = vunpack.c.h.b16 %v1502
      %v1761 = vunpack.c.l.b16 %v1503
      %v1762 = vunpack.c.h.b16 %v1503
      %v1763 = vunpack.c.l.b16 %v1504
      %v1764 = vunpack.c.h.b16 %v1504
      %v1765 = vunpack.c.l.b16 %v1505
      %v1766 = vunpack.c.h.b16 %v1505
      %v1767 = vunpack.c.l.b16 %v1506
      %v1768 = vunpack.c.h.b16 %v1506
      %v1769 = vunpack.c.l.b16 %v1507
      %v1770 = vunpack.c.h.b16 %v1507
      %v1771 = vunpack.c.l.b16 %v1508
      %v1772 = vunpack.c.h.b16 %v1508
      %v1773 = vunpack.c.l.b16 %v1509
      %v1774 = vunpack.c.h.b16 %v1509
      %v1775 = vunpack.c.l.b16 %v1510
      %v1776 = vunpack.c.h.b16 %v1510
      %v1777 = vunpack.c.l.b16 %v1511
      %v1778 = vunpack.c.h.b16 %v1511
      %v1779 = vunpack.c.l.b16 %v1512
      %v1780 = vunpack.c.h.b16 %v1512
      %v1781 = vunpack.c.l.b16 %v1513
      %v1782 = vunpack.c.h.b16 %v1513
      %v1783 = vunpack.c.l.b16 %v1514
      %v1784 = vunpack.c.h.b16 %v1514
      %v1785 = vunpack.c.l.b16 %v1515
      %v1786 = vunpack.c.h.b16 %v1515
      %v1787 = vunpack.c.l.b16 %v1516
      %v1788 = vunpack.c.h.b16 %v1516
      %v1789 = vunpack.c.l.b16 %v1517
      %v1790 = vunpack.c.h.b16 %v1517
      %v1791 = vunpack.c.l.b16 %v1518
      %v1792 = vunpack.c.h.b16 %v1518
      %v1793 = vunpack.c.l.b16 %v1519
      %v1794 = vunpack.c.h.b16 %v1519
      %v1795 = vunpack.c.l.b16 %v1520
      %v1796 = vunpack.c.h.b16 %v1520
      %v1797 = vunpack.c.l.b16 %v1521
      %v1798 = vunpack.c.h.b16 %v1521
      %v1799 = vunpack.c.l.b16 %v1522
      %v1800 = vunpack.c.h.b16 %v1522
      %v1801 = vunpack.c.l.b16 %v1523
      %v1802 = vunpack.c.h.b16 %v1523
      %v1803 = vunpack.c.l.b16 %v1524
      %v1804 = vunpack.c.h.b16 %v1524
      %v1805 = vunpack.c.l.b16 %v1525
      %v1806 = vunpack.c.h.b16 %v1525
      %v1807 = vunpack.c.l.b16 %v1526
      %v1808 = vunpack.c.h.b16 %v1526
      %v1809 = vunpack.c.l.b16 %v1527
      %v1810 = vunpack.c.h.b16 %v1527
      %v1811 = vunpack.c.l.b16 %v1528
      %v1812 = vunpack.c.h.b16 %v1528
      %v1813 = vunpack.c.l.b16 %v1529
      %v1814 = vunpack.c.h.b16 %v1529
      %v1815 = vunpack.c.l.b16 %v1530
      %v1816 = vunpack.c.h.b16 %v1530
      %v1817 = vunpack.c.l.b16 %v1531
      %v1818 = vunpack.c.h.b16 %v1531
      %v1819 = vunpack.c.l.b16 %v1532
      %v1820 = vunpack.c.h.b16 %v1532
      %v1821 = vunpack.c.l.b16 %v1533
      %v1822 = vunpack.c.h.b16 %v1533
      %v1823 = vunpack.c.l.b16 %v1534
      %v1824 = vunpack.c.h.b16 %v1534
      %v1825 = vunpack.c.l.b16 %v1535
      %v1826 = vunpack.c.h.b16 %v1535
      %v1827 = vunpack.c.l.b16 %v1536
      %v1828 = vunpack.c.h.b16 %v1536
      %v1829 = vunpack.c.l.b16 %v1537
      %v1830 = vunpack.c.h.b16 %v1537
      %v1831 = vunpack.c.l.b16 %v1538
      %v1832 = vunpack.c.h.b16 %v1538
      %v1833 = vunpack.c.l.b16 %v1539
      %v1834 = vunpack.c.h.b16 %v1539
      %v1835 = vunpack.c.l.b16 %v1540
      %v1836 = vunpack.c.h.b16 %v1540
      %v1837 = vunpack.c.l.b16 %v1541
      %v1838 = vunpack.c.h.b16 %v1541
      %v1839 = vunpack.c.l.b16 %v1542
      %v1840 = vunpack.c.h.b16 %v1542
      %v1841 = vunpack.c.l.b16 %v1543
      %v1842 = vunpack.c.h.b16 %v1543
      %v1843 = vunpack.c.l.b16 %v1544
      %v1844 = vunpack.c.h.b16 %v1544
      %v1845 = vunpack.c.l.b16 %v1545
      %v1846 = vunpack.c.h.b16 %v1545
      %v1847 = vunpack.c.l.b16 %v1546
      %v1848 = vunpack.c.h.b16 %v1546
      %v1849 = vunpack.c.l.b16 %v1547
      %v1850 = vunpack.c.h.b16 %v1547
      %v1851 = vunpack.c.l.b16 %v1548
      %v1852 = vunpack.c.h.b16 %v1548
      %v1853 = vunpack.c.l.b16 %v1549
      %v1854 = vunpack.c.h.b16 %v1549
      %v1855 = vunpack.c.l.b16 %v1550
      %v1856 = vunpack.c.h.b16 %v1550
      %v1857 = vunpack.c.l.b16 %v1551
      %v1858 = vunpack.c.h.b16 %v1551
      %v1859 = vunpack.c.l.b16 %v1552
      %v1860 = vunpack.c.h.b16 %v1552
      %v1861 = vunpack.c.l.b16 %v1553
      %v1862 = vunpack.c.h.b16 %v1553
      %v1863 = vunpack.c.l.b16 %v1554
      %v1864 = vunpack.c.h.b16 %v1554
      %v1865 = vunpack.c.l.b16 %v1555
      %v1866 = vunpack.c.h.b16 %v1555
      %v1867 = vunpack.c.l.b16 %v1556
      %v1868 = vunpack.c.h.b16 %v1556
      %v1869 = vunpack.c.l.b16 %v1557
      %v1870 = vunpack.c.h.b16 %v1557
      %v1871 = vunpack.c.l.b16 %v1558
      %v1872 = vunpack.c.h.b16 %v1558
      %v1873 = vunpack.c.l.b16 %v1559
      %v1874 = vunpack.c.h.b16 %v1559
      %v1875 = vunpack.c.l.b16 %v1560
      %v1876 = vunpack.c.h.b16 %v1560
      %v1877 = vunpack.c.l.b16 %v1561
      %v1878 = vunpack.c.h.b16 %v1561
      %v1879 = vunpack.c.l.b16 %v1562
      %v1880 = vunpack.c.h.b16 %v1562
      %v1881 = vunpack.c.l.b16 %v1563
      %v1882 = vunpack.c.h.b16 %v1563
      %v1883 = vunpack.c.l.b16 %v1564
      %v1884 = vunpack.c.h.b16 %v1564
      %v1885 = vunpack.c.l.b16 %v1565
      %v1886 = vunpack.c.h.b16 %v1565
      %v1887 = vunpack.c.l.b16 %v1566
      %v1888 = vunpack.c.h.b16 %v1566
      %v1889 = vunpack.c.l.b16 %v1567
      %v1890 = vunpack.c.h.b16 %v1567
      %v1891 = vunpack.c.l.b16 %v1568
      %v1892 = vunpack.c.h.b16 %v1568
      %v1893 = vunpack.c.l.b16 %v1569
      %v1894 = vunpack.c.h.b16 %v1569
      %v1895 = vunpack.c.l.b16 %v1570
      %v1896 = vunpack.c.h.b16 %v1570
      %v1897 = vunpack.c.l.b16 %v1571
      %v1898 = vunpack.c.h.b16 %v1571
      %v1899 = vunpack.c.l.b16 %v1572
      %v1900 = vunpack.c.h.b16 %v1572
      %v1901 = vunpack.c.l.b16 %v1573
      %v1902 = vunpack.c.h.b16 %v1573
      %v1903 = vunpack.c.l.b16 %v1574
      %v1904 = vunpack.c.h.b16 %v1574
      %v1905 = vunpack.c.l.b16 %v1575
      %v1906 = vunpack.c.h.b16 %v1575
      %v1907 = vunpack.c.l.b16 %v1576
      %v1908 = vunpack.c.h.b16 %v1576
      %v1909 = vunpack.c.l.b16 %v1577
      %v1910 = vunpack.c.h.b16 %v1577
      %v1911 = vunpack.c.l.b16 %v1578
      %v1912 = vunpack.c.h.b16 %v1578
      %v1913 = vunpack.c.l.b16 %v1579
      %v1914 = vunpack.c.h.b16 %v1579
      %v1915 = vunpack.c.l.b16 %v1580
      %v1916 = vunpack.c.h.b16 %v1580
      %v1917 = vunpack.c.l.b16 %v1581
      %v1918 = vunpack.c.h.b16 %v1581
      %v1919 = vunpack.c.l.b16 %v1582
      %v1920 = vunpack.c.h.b16 %v1582
      %v1921 = vunpack.c.l.b16 %v1583
      %v1922 = vunpack.c.h.b16 %v1583
      %v1923 = vunpack.c.l.b16 %v1584
      %v1924 = vunpack.c.h.b16 %v1584
      %v1925 = vunpack.c.l.b16 %v1585
      %v1926 = vunpack.c.h.b16 %v1585
      %v1927 = vunpack.c.l.b16 %v1586
      %v1928 = vunpack.c.h.b16 %v1586
      %v1929 = vunpack.c.l.b16 %v1587
      %v1930 = vunpack.c.h.b16 %v1587
      %v1931 = vunpack.c.l.b16 %v1588
      %v1932 = vunpack.c.h.b16 %v1588
      %v1933 = vunpack.c.l.b16 %v1589
      %v1934 = vunpack.c.h.b16 %v1589
      %v1935 = vunpack.c.l.b16 %v1590
      %v1936 = vunpack.c.h.b16 %v1590
      %v1937 = vunpack.c.l.b16 %v1591
      %v1938 = vunpack.c.h.b16 %v1591
      %v1939 = vunpack.c.l.b16 %v1592
      %v1940 = vunpack.c.h.b16 %v1592
      %v1941 = vunpack.c.l.b16 %v1593
      %v1942 = vunpack.c.h.b16 %v1593
      %v1943 = vunpack.c.l.b16 %v1594
      %v1944 = vunpack.c.h.b16 %v1594
      %v1945 = vunpack.c.l.b16 %v1595
      %v1946 = vunpack.c.h.b16 %v1595
      %v1947 = vunpack.c.l.b16 %v1596
      %v1948 = vunpack.c.h.b16 %v1596
      %v1949 = vunpack.c.l.b16 %v1597
      %v1950 = vunpack.c.h.b16 %v1597
      %v1951 = vunpack.c.l.b16 %v1598
      %v1952 = vunpack.c.h.b16 %v1598
      %v1953 = vunpack.c.l.b16 %v1599
      %v1954 = vunpack.c.h.b16 %v1599
      %v1955 = vunpack.c.l.b16 %v1600
      %v1956 = vunpack.c.h.b16 %v1600
      %v1957 = vunpack.c.l.b16 %v1601
      %v1958 = vunpack.c.h.b16 %v1601
      %v1959 = vunpack.c.l.b16 %v1602
      %v1960 = vunpack.c.h.b16 %v1602
      %v1961 = vunpack.c.l.b16 %v1603
      %v1962 = vunpack.c.h.b16 %v1603
      %v1963 = vunpack.c.l.b16 %v1604
      %v1964 = vunpack.c.h.b16 %v1604
      %v1965 = vunpack.c.l.b16 %v1605
      %v1966 = vunpack.c.h.b16 %v1605
      %v1967 = vunpack.c.l.b16 %v1606
      %v1968 = vunpack.c.h.b16 %v1606
      %v1969 = vunpack.c.l.b16 %v1607
      %v1970 = vunpack.c.h.b16 %v1607
      %v1971 = vunpack.c.l.b16 %v1608
      %v1972 = vunpack.c.h.b16 %v1608
      %v1973 = vunpack.c.l.b16 %v1609
      %v1974 = vunpack.c.h.b16 %v1609
      %v1975 = vunpack.c.l.b16 %v1610
      %v1976 = vunpack.c.h.b16 %v1610
      %v1977 = vunpack.c.l.b16 %v1611
      %v1978 = vunpack.c.h.b16 %v1611
      %v1979 = vunpack.c.l.b16 %v1612
      %v1980 = vunpack.c.h.b16 %v1612
      %v1981 = vunpack.c.l.b16 %v1613
      %v1982 = vunpack.c.h.b16 %v1613
      %v1983 = vunpack.c.l.b16 %v1614
      %v1984 = vunpack.c.h.b16 %v1614
      %v1985 = vunpack.c.l.b16 %v1615
      %v1986 = vunpack.c.h.b16 %v1615
      %v1987 = vunpack.c.l.b16 %v1616
      %v1988 = vunpack.c.h.b16 %v1616
      %v1989 = vunpack.c.l.b16 %v1617
      %v1990 = vunpack.c.h.b16 %v1617
      %v1991 = vunpack.c.l.b16 %v1618
      %v1992 = vunpack.c.h.b16 %v1618
      %v1993 = vunpack.c.l.b16 %v1619
      %v1994 = vunpack.c.h.b16 %v1619
      %v1995 = vunpack.c.l.b16 %v1620
      %v1996 = vunpack.c.h.b16 %v1620
      %v1997 = vunpack.c.l.b16 %v1621
      %v1998 = vunpack.c.h.b16 %v1621
      %v1999 = vunpack.c.l.b16 %v1622
      %v2000 = vunpack.c.h.b16 %v1622
      %v2001 = vunpack.c.l.b16 %v1623
      %v2002 = vunpack.c.h.b16 %v1623
      %v2003 = vunpack.c.l.b16 %v1624
      %v2004 = vunpack.c.h.b16 %v1624
      %v2005 = vunpack.c.l.b16 %v1625
      %v2006 = vunpack.c.h.b16 %v1625
      %v2007 = vunpack.c.l.b16 %v1626
      %v2008 = vunpack.c.h.b16 %v1626
      %v2009 = vunpack.c.l.b16 %v1627
      %v2010 = vunpack.c.h.b16 %v1627
      %v2011 = vunpack.c.l.b16 %v1628
      %v2012 = vunpack.c.h.b16 %v1628
      %v2013 = vpack.c.b16 %v1765, %v1757
      %v2014 = vpack.c.b16 %v1766, %v1758
      %v2015 = vpack.c.b16 %v1767, %v1759
      %v2016 = vpack.c.b16 %v1768, %v1760
      %v2017 = vpack.c.b16 %v1769, %v1761
      %v2018 = vpack.c.b16 %v1770, %v1762
      %v2019 = vpack.c.b16 %v1771, %v1763
      %v2020 = vpack.c.b16 %v1772, %v1764
      %v2021 = vpack.c.b16 %v1781, %v1773
      %v2022 = vpack.c.b16 %v1782, %v1774
      %v2023 = vpack.c.b16 %v1783, %v1775
      %v2024 = vpack.c.b16 %v1784, %v1776
      %v2025 = vpack.c.b16 %v1785, %v1777
      %v2026 = vpack.c.b16 %v1786, %v1778
      %v2027 = vpack.c.b16 %v1787, %v1779
      %v2028 = vpack.c.b16 %v1788, %v1780
      %v2029 = vpack.c.b16 %v1797, %v1789
      %v2030 = vpack.c.b16 %v1798, %v1790
      %v2031 = vpack.c.b16 %v1799, %v1791
      %v2032 = vpack.c.b16 %v1800, %v1792
      %v2033 = vpack.c.b16 %v1801, %v1793
      %v2034 = vpack.c.b16 %v1802, %v1794
      %v2035 = vpack.c.b16 %v1803, %v1795
      %v2036 = vpack.c.b16 %v1804, %v1796
      %v2037 = vpack.c.b16 %v1813, %v1805
      %v2038 = vpack.c.b16 %v1814, %v1806
      %v2039 = vpack.c.b16 %v1815, %v1807
      %v2040 = vpack.c.b16 %v1816, %v1808
      %v2041 = vpack.c.b16 %v1817, %v1809
      %v2042 = vpack.c.b16 %v1818, %v1810
      %v2043 = vpack.c.b16 %v1819, %v1811
      %v2044 = vpack.c.b16 %v1820, %v1812
      %v2045 = vpack.c.b16 %v1829, %v1821
      %v2046 = vpack.c.b16 %v1830, %v1822
      %v2047 = vpack.c.b16 %v1831, %v1823
      %v2048 = vpack.c.b16 %v1832, %v1824
      %v2049 = vpack.c.b16 %v1833, %v1825
      %v2050 = vpack.c.b16 %v1834, %v1826
      %v2051 = vpack.c.b16 %v1835, %v1827
      %v2052 = vpack.c.b16 %v1836, %v1828
      %v2053 = vpack.c.b16 %v1845, %v1837
      %v2054 = vpack.c.b16 %v1846, %v1838
      %v2055 = vpack.c.b16 %v1847, %v1839
      %v2056 = vpack.c.b16 %v1848, %v1840
      %v2057 = vpack.c.b16 %v1849, %v1841
      %v2058 = vpack.c.b16 %v1850, %v1842
      %v2059 = vpack.c.b16 %v1851, %v1843
      %v2060 = vpack.c.b16 %v1852, %v1844
      %v2061 = vpack.c.b16 %v1861, %v1853
      %v2062 = vpack.c.b16 %v1862, %v1854
      %v2063 = vpack.c.b16 %v1863, %v1855
      %v2064 = vpack.c.b16 %v1864, %v1856
      %v2065 = vpack.c.b16 %v1865, %v1857
      %v2066 = vpack.c.b16 %v1866, %v1858
      %v2067 = vpack.c.b16 %v1867, %v1859
      %v2068 = vpack.c.b16 %v1868, %v1860
      %v2069 = vpack.c.b16 %v1877, %v1869
      %v2070 = vpack.c.b16 %v1878, %v1870
      %v2071 = vpack.c.b16 %v1879, %v1871
      %v2072 = vpack.c.b16 %v1880, %v1872
      %v2073 = vpack.c.b16 %v1881, %v1873
      %v2074 = vpack.c.b16 %v1882, %v1874
      %v2075 = vpack.c.b16 %v1883, %v1875
      %v2076 = vpack.c.b16 %v1884, %v1876
      %v2077 = vpack.c.b16 %v1893, %v1885
      %v2078 = vpack.c.b16 %v1894, %v1886
      %v2079 = vpack.c.b16 %v1895, %v1887
      %v2080 = vpack.c.b16 %v1896, %v1888
      %v2081 = vpack.c.b16 %v1897, %v1889
      %v2082 = vpack.c.b16 %v1898, %v1890
      %v2083 = vpack.c.b16 %v1899, %v1891
      %v2084 = vpack.c.b16 %v1900, %v1892
      %v2085 = vpack.c.b16 %v1909, %v1901
      %v2086 = vpack.c.b16 %v1910, %v1902
      %v2087 = vpack.c.b16 %v1911, %v1903
      %v2088 = vpack.c.b16 %v1912, %v1904
      %v2089 = vpack.c.b16 %v1913, %v1905
      %v2090 = vpack.c.b16 %v1914, %v1906
      %v2091 = vpack.c.b16 %v1915, %v1907
      %v2092 = vpack.c.b16 %v1916, %v1908
      %v2093 = vpack.c.b16 %v1925, %v1917
      %v2094 = vpack.c.b16 %v1926, %v1918
      %v2095 = vpack.c.b16 %v1927, %v1919
      %v2096 = vpack.c.b16 %v1928, %v1920
      %v2097 = vpack.c.b16 %v1929, %v1921
      %v2098 = vpack.c.b16 %v1930, %v1922
      %v2099 = vpack.c.b16 %v1931, %v1923
      %v2100 = vpack.c.b16 %v1932, %v1924
      %v2101 = vpack.c.b16 %v1941, %v1933
      %v2102 = vpack.c.b16 %v1942, %v1934
      %v2103 = vpack.c.b16 %v1943, %v1935
      %v2104 = vpack.c.b16 %v1944, %v1936
      %v2105 = vpack.c.b16 %v1945, %v1937
      %v2106 = vpack.c.b16 %v1946, %v1938
      %v2107 = vpack.c.b16 %v1947, %v1939
      %v2108 = vpack.c.b16 %v1948, %v1940
      %v2109 = vpack.c.b16 %v1957, %v1949
      %v2110 = vpack.c.b16 %v1958, %v1950
      %v2111 = vpack.c.b16 %v1959, %v1951
      %v2112 = vpack.c.b16 %v1960, %v1952
      %v2113 = vpack.c.b16 %v1961, %v1953
      %v2114 = vpack.c.b16 %v1962, %v1954
      %v2115 = vpack.c.b16 %v1963, %v1955
      %v2116 = vpack.c.b16 %v1964, %v1956
      %v2117 = vpack.c.b16 %v1973, %v1965
      %v2118 = vpack.c.b16 %v1974, %v1966
      %v2119 = vpack.c.b16 %v1975, %v1967
      %v2120 = vpack.c.b16 %v1976, %v1968
      %v2121 = vpack.c.b16 %v1977, %v1969
      %v2122 = vpack.c.b16 %v1978, %v1970
      %v2123 = vpack.c.b16 %v1979, %v1971
      %v2124 = vpack.c.b16 %v1980, %v1972
      %v2125 = vpack.c.b16 %v1989, %v1981
      %v2126 = vpack.c.b16 %v1990, %v1982
      %v2127 = vpack.c.b16 %v1991, %v1983
      %v2128 = vpack.c.b16 %v1992, %v1984
      %v2129 = vpack.c.b16 %v1993, %v1985
      %v2130 = vpack.c.b16 %v1994, %v1986
      %v2131 = vpack.c.b16 %v1995, %v1987
      %v2132 = vpack.c.b16 %v1996, %v1988
      %v2133 = vpack.c.b16 %v2005, %v1997
      %v2134 = vpack.c.b16 %v2006, %v1998
      %v2135 = vpack.c.b16 %v2007, %v1999
      %v2136 = vpack.c.b16 %v2008, %v2000
      %v2137 = vpack.c.b16 %v2009, %v2001
      %v2138 = vpack.c.b16 %v2010, %v2002
      %v2139 = vpack.c.b16 %v2011, %v2003
      %v2140 = vpack.c.b16 %v2012, %v2004
      %2269 = vmatprep.subr.bf16.mxu0 %v2014
      %2270 = vmatpush1.bf16.msra.mxu0 %v2013
      %2271 = vmatprep.subr.bf16.mxu0 %v2022
      %2272 = vmatpush1.bf16.msra.mxu0 %v2021
      %2273 = vmatprep.subr.bf16.mxu0 %v2030
      %2274 = vmatpush1.bf16.msra.mxu0 %v2029
      %2275 = vmatprep.subr.bf16.mxu0 %v2038
      %2276 = vmatpush1.bf16.msra.mxu0 %v2037
      %2277 = vmatprep.subr.bf16.mxu0 %v2046
      %2278 = vmatpush1.bf16.msra.mxu0 %v2045
      %2279 = vmatprep.subr.bf16.mxu0 %v2054
      %2280 = vmatpush1.bf16.msra.mxu0 %v2053
      %2281 = vmatprep.subr.bf16.mxu0 %v2062
      %2282 = vmatpush1.bf16.msra.mxu0 %v2061
      %2283 = vmatprep.subr.bf16.mxu0 %v2070
      %2284 = vmatpush1.bf16.msra.mxu0 %v2069
      %2285 = vmatprep.subr.bf16.mxu0 %v2078
      %2286 = vmatpush1.bf16.msra.mxu0 %v2077
      %2287 = vmatprep.subr.bf16.mxu0 %v2086
      %2288 = vmatpush1.bf16.msra.mxu0 %v2085
      %2289 = vmatprep.subr.bf16.mxu0 %v2094
      %2290 = vmatpush1.bf16.msra.mxu0 %v2093
      %2291 = vmatprep.subr.bf16.mxu0 %v2102
      %2292 = vmatpush1.bf16.msra.mxu0 %v2101
      %2293 = vmatprep.subr.bf16.mxu0 %v2110
      %2294 = vmatpush1.bf16.msra.mxu0 %v2109
      %2295 = vmatprep.subr.bf16.mxu0 %v2118
      %2296 = vmatpush1.bf16.msra.mxu0 %v2117
      %2297 = vmatprep.subr.bf16.mxu0 %v2126
      %2298 = vmatpush1.bf16.msra.mxu0 %v2125
      %2299 = vmatprep.subr.bf16.mxu0 %v2134
      %2300 = vmatpush1.bf16.msra.mxu0 %v2133
      %2301 = vmatprep.mubr.bf16.mxu0 %v1500
      %2302 = vmatmul.mubr.bf16.gmra.mrb[0].mxu0 %v1499
      %v2303 = vpop.f32.mrb[0].mxu0
      %v2304 = vadd.f32 0.0, %v2303
      %v2305 = vpop.f32.mrb[0].mxu0
      %v2306 = vadd.f32 0.0, %v2305
      %v2307 = vpop.f32.mrb[0].mxu0
      %v2308 = vpop.f32.mrb[0].mxu0
      %2309 = vdwg.mxu0
      %2310 = vmatprep.subr.bf16.mxu0 %v2016
      %2311 = vmatpush1.bf16.msra.mxu0 %v2015
      %2312 = vmatprep.subr.bf16.mxu0 %v2024
      %2313 = vmatpush1.bf16.msra.mxu0 %v2023
      %2314 = vmatprep.subr.bf16.mxu0 %v2032
      %2315 = vmatpush1.bf16.msra.mxu0 %v2031
      %2316 = vmatprep.subr.bf16.mxu0 %v2040
      %2317 = vmatpush1.bf16.msra.mxu0 %v2039
      %2318 = vmatprep.subr.bf16.mxu0 %v2048
      %2319 = vmatpush1.bf16.msra.mxu0 %v2047
      %2320 = vmatprep.subr.bf16.mxu0 %v2056
      %2321 = vmatpush1.bf16.msra.mxu0 %v2055
      %2322 = vmatprep.subr.bf16.mxu0 %v2064
      %2323 = vmatpush1.bf16.msra.mxu0 %v2063
      %2324 = vmatprep.subr.bf16.mxu0 %v2072
      %2325 = vmatpush1.bf16.msra.mxu0 %v2071
      %2326 = vmatprep.subr.bf16.mxu0 %v2080
      %2327 = vmatpush1.bf16.msra.mxu0 %v2079
      %2328 = vmatprep.subr.bf16.mxu0 %v2088
      %2329 = vmatpush1.bf16.msra.mxu0 %v2087
      %2330 = vmatprep.subr.bf16.mxu0 %v2096
      %2331 = vmatpush1.bf16.msra.mxu0 %v2095
      %2332 = vmatprep.subr.bf16.mxu0 %v2104
      %2333 = vmatpush1.bf16.msra.mxu0 %v2103
      %2334 = vmatprep.subr.bf16.mxu0 %v2112
      %2335 = vmatpush1.bf16.msra.mxu0 %v2111
      %2336 = vmatprep.subr.bf16.mxu0 %v2120
      %2337 = vmatpush1.bf16.msra.mxu0 %v2119
      %2338 = vmatprep.subr.bf16.mxu0 %v2128
      %2339 = vmatpush1.bf16.msra.mxu0 %v2127
      %2340 = vmatprep.subr.bf16.mxu0 %v2136
      %2341 = vmatpush1.bf16.msra.mxu0 %v2135
      %2342 = vmatprep.mubr.bf16.mxu0 %v1500
      %2343 = vmatmul.mubr.bf16.gmra.mrb[0].mxu0 %v1499
      %v2344 = vpop.f32.mrb[0].mxu0
      %v2345 = vadd.f32 0.0, %v2344
      %v2346 = vpop.f32.mrb[0].mxu0
      %v2347 = vadd.f32 0.0, %v2346
      %v2348 = vpop.f32.mrb[0].mxu0
      %v2349 = vpop.f32.mrb[0].mxu0
      %2350 = vdwg.mxu0
      %2351 = vmatprep.subr.bf16.mxu0 %v2018
      %2352 = vmatpush1.bf16.msra.mxu0 %v2017
      %2353 = vmatprep.subr.bf16.mxu0 %v2026
      %2354 = vmatpush1.bf16.msra.mxu0 %v2025
      %2355 = vmatprep.subr.bf16.mxu0 %v2034
      %2356 = vmatpush1.bf16.msra.mxu0 %v2033
      %2357 = vmatprep.subr.bf16.mxu0 %v2042
      %2358 = vmatpush1.bf16.msra.mxu0 %v2041
      %2359 = vmatprep.subr.bf16.mxu0 %v2050
      %2360 = vmatpush1.bf16.msra.mxu0 %v2049
      %2361 = vmatprep.subr.bf16.mxu0 %v2058
      %2362 = vmatpush1.bf16.msra.mxu0 %v2057
      %2363 = vmatprep.subr.bf16.mxu0 %v2066
      %2364 = vmatpush1.bf16.msra.mxu0 %v2065
      %2365 = vmatprep.subr.bf16.mxu0 %v2074
      %2366 = vmatpush1.bf16.msra.mxu0 %v2073
      %2367 = vmatprep.subr.bf16.mxu0 %v2082
      %2368 = vmatpush1.bf16.msra.mxu0 %v2081
      %2369 = vmatprep.subr.bf16.mxu0 %v2090
      %2370 = vmatpush1.bf16.msra.mxu0 %v2089
      %2371 = vmatprep.subr.bf16.mxu0 %v2098
      %2372 = vmatpush1.bf16.msra.mxu0 %v2097
      %2373 = vmatprep.subr.bf16.mxu0 %v2106
      %2374 = vmatpush1.bf16.msra.mxu0 %v2105
      %2375 = vmatprep.subr.bf16.mxu0 %v2114
      %2376 = vmatpush1.bf16.msra.mxu0 %v2113
      %2377 = vmatprep.subr.bf16.mxu0 %v2122
      %2378 = vmatpush1.bf16.msra.mxu0 %v2121
      %2379 = vmatprep.subr.bf16.mxu0 %v2130
      %2380 = vmatpush1.bf16.msra.mxu0 %v2129
      %2381 = vmatprep.subr.bf16.mxu0 %v2138
      %2382 = vmatpush1.bf16.msra.mxu0 %v2137
      %2383 = vmatprep.mubr.bf16.mxu0 %v1500
      %2384 = vmatmul.mubr.bf16.gmra.mrb[0].mxu0 %v1499
      %v2385 = vpop.f32.mrb[0].mxu0
      %v2386 = vadd.f32 0.0, %v2385
      %v2387 = vpop.f32.mrb[0].mxu0
      %v2388 = vadd.f32 0.0, %v2387
      %v2389 = vpop.f32.mrb[0].mxu0
      %v2390 = vpop.f32.mrb[0].mxu0
      %2391 = vdwg.mxu0
      %2392 = vmatprep.subr.bf16.mxu0 %v2020
      %2393 = vmatpush1.bf16.msra.mxu0 %v2019
      %2394 = vmatprep.subr.bf16.mxu0 %v2028
      %2395 = vmatpush1.bf16.msra.mxu0 %v2027
      %2396 = vmatprep.subr.bf16.mxu0 %v2036
      %2397 = vmatpush1.bf16.msra.mxu0 %v2035
      %2398 = vmatprep.subr.bf16.mxu0 %v2044
      %2399 = vmatpush1.bf16.msra.mxu0 %v2043
      %2400 = vmatprep.subr.bf16.mxu0 %v2052
      %2401 = vmatpush1.bf16.msra.mxu0 %v2051
      %2402 = vmatprep.subr.bf16.mxu0 %v2060
      %2403 = vmatpush1.bf16.msra.mxu0 %v2059
      %2404 = vmatprep.subr.bf16.mxu0 %v2068
      %2405 = vmatpush1.bf16.msra.mxu0 %v2067
      %2406 = vmatprep.subr.bf16.mxu0 %v2076
      %2407 = vmatpush1.bf16.msra.mxu0 %v2075
      %2408 = vmatprep.subr.bf16.mxu0 %v2084
      %2409 = vmatpush1.bf16.msra.mxu0 %v2083
      %2410 = vmatprep.subr.bf16.mxu0 %v2092
      %2411 = vmatpush1.bf16.msra.mxu0 %v2091
      %2412 = vmatprep.subr.bf16.mxu0 %v2100
      %2413 = vmatpush1.bf16.msra.mxu0 %v2099
      %2414 = vmatprep.subr.bf16.mxu0 %v2108
      %2415 = vmatpush1.bf16.msra.mxu0 %v2107
      %2416 = vmatprep.subr.bf16.mxu0 %v2116
      %2417 = vmatpush1.bf16.msra.mxu0 %v2115
      %2418 = vmatprep.subr.bf16.mxu0 %v2124
      %2419 = vmatpush1.bf16.msra.mxu0 %v2123
      %2420 = vmatprep.subr.bf16.mxu0 %v2132
      %2421 = vmatpush1.bf16.msra.mxu0 %v2131
      %2422 = vmatprep.subr.bf16.mxu0 %v2140
      %2423 = vmatpush1.bf16.msra.mxu0 %v2139
      %2424 = vmatprep.mubr.bf16.mxu0 %v1500
      %2425 = vmatmul.mubr.bf16.gmra.mrb[0].mxu0 %v1499
      %v2426 = vpop.f32.mrb[0].mxu0
      %v2427 = vadd.f32 0.0, %v2426
      %v2428 = vpop.f32.mrb[0].mxu0
      %v2429 = vadd.f32 0.0, %v2428
      %v2430 = vpop.f32.mrb[0].mxu0
      %v2431 = vpop.f32.mrb[0].mxu0
      %2432 = vdwg.mxu0
      %v2441 = vcombine.low %v2304, %v2306
      %v2442 = vcombine.low %v2345, %v2347
      %v2443 = vcombine.low %v2386, %v2388
      %v2444 = vcombine.low %v2427, %v2429
      %2449 = vst [vmem:[%s406] sm:$0x77] %v2441
      %2450 = vst [vmem:[%s406 + $0x8] sm:$0x77] %v2442
      %2451 = vst [vmem:[%s406 + $0x10] sm:$0x77] %v2443
      %2452 = vst [vmem:[%s406 + $0x18] sm:$0x77] %v2444
      %p2453 = scmp.lt.s32.totalorder %s22, 1
      %s2454 = scalar_select %p2453, %s22, 1
      %s2455 = smul.addr %s2454, 8
      %s2456 = smul.addr %s2455, 4
      %s2457 = scalar_lea.vmem %s11, %s2456
      // Predicated region
      $region65: #{lraspp_forward.1} parent=63 // pred_check
        %p2458 = pneg %p281
      $region66: #{lraspp_forward.1} parent=63 // pred_check_branch
        %2460 = sbr.rel (%p2458) target = $region68
      $region67: #{lraspp_forward.1} parent=63 // pred_region
        _
      $region68: #{lraspp_forward.1} parent=63 // pred_fallthru
        _
    $region64: #{lraspp_forward.1} parent=5 // pred_fallthru
      _
    %p2461 = scmp.le.s32.totalorder 2, %s17
    // Predicated region
    $region69: #{lraspp_forward.1} parent=5 // pred_check
      %p2462 = pneg %p2461
    $region70: #{lraspp_forward.1} parent=5 // pred_check_branch
      %2464 = sbr.rel (%p2462) target = $region72
    $region71: #{lraspp_forward.1} parent=5 // pred_region
      %s2465 = ssub.s32 %s17, 2
      // Predicated region
      $region73: #{lraspp_forward.1} parent=71 // pred_check
        %p2466 = pneg %p287
      $region74: #{lraspp_forward.1} parent=71 // pred_check_branch
        %2468 = sbr.rel (%p2466) target = $region76
      $region75: #{lraspp_forward.1} parent=71 // pred_region
        %p2469 = scmp.lt.s32.totalorder %s23, 1
        %s2470 = scalar_select %p2469, %s23, 1
        %s2471 = smul.addr %s2470, 8
        %s2472 = smul.addr %s2471, 4
        %s2473 = scalar_lea.vmem %s11, %s2472
      $region76: #{lraspp_forward.1} parent=71 // pred_fallthru
        _
    $region72: #{lraspp_forward.1} parent=5 // pred_fallthru
      _
  $region6: #{lraspp_forward.1} parent=0 // loop_footer
    %s21 = sadd.s32 1, %s17
  $region7: #{lraspp_forward.1} parent=0 // loop_footer_branch
    %16 = sbr.rel target = $region3
  $region8: #{lraspp_forward.1} parent=0 // loop_exit
    _

</llo_original>
